<compile_context>
chip_gen: v7x
topology: tpu7x:2x2x1
jax: 0.10.0
libtpu: 0.0.40
codegen_flags: <defaults>
</compile_context>

<pallas_src>
import math

import jax
import jax.numpy as jnp
import numpy as np
from jax.experimental import pallas as pl
from jax.experimental.pallas import tpu as pltpu

D_MODEL = 32
NUM_HEADS = 4
HEAD_DIM = D_MODEL // NUM_HEADS
B = 2   # batch
T = 8   # nearby tasks
A = 4   # nearby AGVs

assert T & (T - 1) == 0 and A & (A - 1) == 0, "mask math assumes power-of-two T, A"
LOG2_T = T.bit_length() - 1
LOG2_A = A.bit_length() - 1

# ----------------------------------------------------------------------------
# Packed-slab layouts (shared between host packer and kernel; all static)
# ----------------------------------------------------------------------------
_BIG_ORDER = [  # (name, lane width) -> WBIG is (D_MODEL, sum(width))
    ("t_wqkv", 3 * D_MODEL), ("t_wo", D_MODEL), ("a_wq", D_MODEL),
    ("a_wkv", 2 * D_MODEL), ("a_wo", D_MODEL), ("fg_w1", D_MODEL),
    ("fg_w2", D_MODEL), ("out_w", D_MODEL),
]
BIG_OFF = {}
_o = 0
for _n, _w in _BIG_ORDER:
    BIG_OFF[_n] = (_o, _w)
    _o += _w
BIG_COLS = _o  # 352

_SMALL_ORDER = [  # (name, rows) -> WSMALL is (sum(rows), D_MODEL)
    ("b_agv", 1), ("b_oagv", 1),
    ("t_bq", 1), ("t_bk", 1), ("t_bv", 1), ("t_bo", 1),
    ("a_bq", 1), ("a_bk", 1), ("a_bv", 1), ("a_bo", 1),
    ("ln_g", 1), ("ln_b", 1), ("fg_b", 1), ("out_b", 1),
    ("w_agv", 5), ("w_task", 4), ("w_oagv", 2),
    ("task_bias_pe", B * T),
]
SMALL_OFF = {}
_o = 0
for _n, _r in _SMALL_ORDER:
    SMALL_OFF[_n] = (_o, _r)
    _o += _r
SMALL_ROWS = _o  # 41

# Lane-dense output slab layout: (16, 128)
OUT_ROWS = B * T                      # 16
OUT_COLS = 128
COL_TASKW = 0                         # (B*T, B*T) head-avg task attention (per-batch diag blocks)
COL_CTX = B * T                       # (B, D) context
COL_FW = COL_CTX + D_MODEL            # (B, D) fusion weights
COL_AW = COL_FW + D_MODEL             # (B, B*A) head-avg agent attention
assert COL_AW + B * A <= OUT_COLS


# ----------------------------------------------------------------------------
# Parameter construction (deterministic, synthetic)
# ----------------------------------------------------------------------------
def make_positional_encoding(d_model: int, max_len: int = 100) -> jnp.ndarray:
    pe = np.zeros((max_len, d_model), dtype=np.float32)
    position = np.arange(0, max_len, dtype=np.float32)[:, None]
    div_term = np.exp(
        np.arange(0, d_model, 2, dtype=np.float32) * -(math.log(10000.0) / d_model)
    )
    pe[:, 0::2] = np.sin(position * div_term)
    pe[:, 1::2] = np.cos(position * div_term)
    return jnp.asarray(pe)


def init_params(key):
    def lin(k, fan_in, fan_out):
        kw, kb = jax.random.split(k)
        w = jax.random.normal(kw, (fan_in, fan_out), jnp.float32) * 0.1
        b = jax.random.normal(kb, (1, fan_out), jnp.float32) * 0.1
        return w, b

    ks = jax.random.split(key, 13)
    p = {}
    p["w_agv"], p["b_agv"] = lin(ks[0], 5, D_MODEL)
    p["w_task"], p["b_task"] = lin(ks[1], 4, D_MODEL)
    p["w_oagv"], p["b_oagv"] = lin(ks[2], 2, D_MODEL)
    p["t_wq"], p["t_bq"] = lin(ks[3], D_MODEL, D_MODEL)
    p["t_wk"], p["t_bk"] = lin(ks[4], D_MODEL, D_MODEL)
    p["t_wv"], p["t_bv"] = lin(ks[5], D_MODEL, D_MODEL)
    p["t_wo"], p["t_bo"] = lin(ks[6], D_MODEL, D_MODEL)
    p["a_wq"], p["a_bq"] = lin(ks[7], D_MODEL, D_MODEL)
    p["a_wk"], p["a_bk"] = lin(ks[8], D_MODEL, D_MODEL)
    p["a_wv"], p["a_bv"] = lin(ks[9], D_MODEL, D_MODEL)
    p["a_wo"], p["a_bo"] = lin(ks[10], D_MODEL, D_MODEL)
    p["ln_g"] = jnp.ones((1, D_MODEL), jnp.float32)
    p["ln_b"] = jnp.zeros((1, D_MODEL), jnp.float32)
    p["fg_w"], p["fg_b"] = lin(ks[11], 2 * D_MODEL, D_MODEL)
    p["out_w"], p["out_b"] = lin(ks[12], D_MODEL, D_MODEL)
    p["pe"] = make_positional_encoding(D_MODEL)[:T]
    return p


def pack_params(p):
    """Pack the 29 parameters into two lane-dense slabs (done once, host-side)."""
    wbig = jnp.concatenate(
        [
            p["t_wq"], p["t_wk"], p["t_wv"],          # t_wqkv   [0:96]
            p["t_wo"],                                 # t_wo     [96:128]
            p["a_wq"],                                 # a_wq     [128:160]
            p["a_wk"], p["a_wv"],                      # a_wkv    [160:224]
            p["a_wo"],                                 # a_wo     [224:256]
            p["fg_w"][:D_MODEL], p["fg_w"][D_MODEL:],  # fg_w1/2  [256:320]
            p["out_w"],                                # out_w    [320:352]
        ],
        axis=1,
    )
    # Fold positional encoding into the task projection bias (per-row bias).
    task_bias_pe = p["b_task"] + jnp.tile(p["pe"], (B, 1))   # (B*T, D)
    src = dict(p)
    src["task_bias_pe"] = task_bias_pe
    wsmall = jnp.concatenate([src[n] for n, _ in _SMALL_ORDER], axis=0)
    assert wbig.shape == (D_MODEL, BIG_COLS)
    assert wsmall.shape == (SMALL_ROWS, D_MODEL)
    return wbig, wsmall


# ----------------------------------------------------------------------------
# Pallas kernel (single program, whole batch)
# ----------------------------------------------------------------------------
def encoder_kernel(own_ref, tasks_ref, agvs_ref, wbig_ref, wsmall_ref, out_ref):
    f32 = jnp.float32
    H, HD = NUM_HEADS, HEAD_DIM
    bt = B * T
    scale = 1.0 / math.sqrt(HD)

    own = own_ref[...]      # (B, 5)
    tasks = tasks_ref[...]  # (B*T, 4)
    agvs = agvs_ref[...]    # (B*A, 2)
    WB = wbig_ref[...]      # (D, 352)
    WS = wsmall_ref[...]    # (41, D)

    def wb(name):
        s, n = BIG_OFF[name]
        return WB[:, s:s + n]

    def ws(name):
        s, n = SMALL_OFF[name]
        return WS[s:s + n, :]

    def dot(a, b):
        return jnp.dot(a, b, preferred_element_type=f32)

    def dot_nt(a, b):  # a @ b.T without an explicit transpose op
        return jax.lax.dot_general(a, b, (((1,), (1,)), ((), ())),
                                   preferred_element_type=f32)

    def pack_heads(x):       # (L, H*HD) -> (H*L, HD), head-major rows
        return jnp.concatenate([x[:, h * HD:(h + 1) * HD] for h in range(H)], axis=0)

    def unpack_heads(x, L):  # (H*L, HD) -> (L, H*HD)
        return jnp.concatenate([x[h * L:(h + 1) * L, :] for h in range(H)], axis=1)

    def softmax_rows(s):
        s = s - jnp.max(s, axis=-1, keepdims=True)
        e = jnp.exp(s)
        return e * pl.reciprocal(jnp.sum(e, axis=-1, keepdims=True), approx=True)

    # ---- input projections (PE folded into the per-row task bias) ----
    own_emb = dot(own, ws("w_agv")) + ws("b_agv")              # (B, D)
    task_emb = dot(tasks, ws("w_task")) + ws("task_bias_pe")   # (B*T, D)
    agv_emb = dot(agvs, ws("w_oagv")) + ws("b_oagv")           # (B*A, D)

    # ---- task self-attention: all batches & heads in ONE score matmul ----
    qkv = dot(task_emb, wb("t_wqkv"))                          # (B*T, 3D)
    q = pack_heads(qkv[:, 0:D_MODEL] + ws("t_bq"))             # (H*B*T, HD)
    k = pack_heads(qkv[:, D_MODEL:2 * D_MODEL] + ws("t_bk"))
    v = pack_heads(qkv[:, 2 * D_MODEL:3 * D_MODEL] + ws("t_bv"))

    n = H * B * T
    s = dot_nt(q * scale, k)                                   # (n, n)
    rows = jax.lax.broadcasted_iota(jnp.int32, (n, n), 0)
    cols = jax.lax.broadcasted_iota(jnp.int32, (n, n), 1)
    valid = (rows >> LOG2_T) == (cols >> LOG2_T)               # same (head, batch) block
    p_att = softmax_rows(jnp.where(valid, s, -1e30))
    attn = unpack_heads(dot(p_att, v), bt)                     # (B*T, D)
    task_att_out = dot(attn, wb("t_wo")) + ws("t_bo")

    # head-averaged attention weights: sum per-head diagonal blocks (cross blocks are 0)
    task_w = p_att[0:bt, 0:bt]
    for h in range(1, H):
        task_w = task_w + p_att[h * bt:(h + 1) * bt, h * bt:(h + 1) * bt]
    task_w = task_w * (1.0 / H)                                # (B*T, B*T)

    # ---- residual + layernorm (rsqrt on EUP) ----
    x = task_att_out + task_emb
    mu = jnp.mean(x, axis=-1, keepdims=True)
    xc = x - mu
    var = jnp.mean(xc * xc, axis=-1, keepdims=True)
    task_norm = xc * jax.lax.rsqrt(var + 1e-5) * ws("ln_g") + ws("ln_b")

    # ---- masked mean over task slots, per batch ----
    tmask = (jnp.sum(tasks, axis=-1, keepdims=True) != 0.0).astype(f32)  # (B*T, 1)
    masked = task_norm * tmask
    sums, cnts = [], []
    for b in range(B):
        sums.append(jnp.sum(masked[b * T:(b + 1) * T], axis=0, keepdims=True))
        cnts.append(jnp.sum(tmask[b * T:(b + 1) * T], axis=0, keepdims=True))
    summed = jnp.concatenate(sums, axis=0)                     # (B, D)
    counts = jnp.concatenate(cnts, axis=0)                     # (B, 1)
    task_context = summed * pl.reciprocal(jnp.maximum(counts, 1.0), approx=True)

    # ---- agent cross-attention (query = own-state embedding), fused K/V ----
    q_a = pack_heads(dot(own_emb, wb("a_wq")) + ws("a_bq"))    # (H*B, HD)
    kv_a = dot(agv_emb, wb("a_wkv"))                           # (B*A, 2D)
    k_a = pack_heads(kv_a[:, 0:D_MODEL] + ws("a_bk"))          # (H*B*A, HD)
    v_a = pack_heads(kv_a[:, D_MODEL:2 * D_MODEL] + ws("a_bv"))

    sc = dot_nt(q_a * scale, k_a)                              # (H*B, H*B*A)
    r2 = jax.lax.broadcasted_iota(jnp.int32, (H * B, H * B * A), 0)
    c2 = jax.lax.broadcasted_iota(jnp.int32, (H * B, H * B * A), 1)
    valid2 = r2 == (c2 >> LOG2_A)                              # same (head, batch)
    pc = softmax_rows(jnp.where(valid2, sc, -1e30))
    agent_out = unpack_heads(dot(pc, v_a), B)                  # (B, D)
    agent_context = dot(agent_out, wb("a_wo")) + ws("a_bo")

    agent_w = pc[0:B, 0:B * A]
    for h in range(1, H):
        agent_w = agent_w + pc[h * B:(h + 1) * B, h * B * A:(h + 1) * B * A]
    agent_w = agent_w * (1.0 / H)                              # (B, B*A)

    # ---- fusion gate (split weights replace the concat) + output projection ----
    fw = jax.nn.sigmoid(dot(task_context, wb("fg_w1"))
                        + dot(agent_context, wb("fg_w2")) + ws("fg_b"))
    final = fw * task_context + (1.0 - fw) * agent_context
    out_ctx = jnp.maximum(dot(final, wb("out_w")) + ws("out_b"), 0.0)
    # TODO(synk): nn.Dropout (attention & output projection) is an eval-mode identity here.

    # ---- single lane-dense (16, 128) output slab ----
    out_ref[...] = jnp.zeros_like(out_ref)
    out_ref[:, COL_TASKW:COL_TASKW + bt] = task_w
    out_ref[0:B, COL_CTX:COL_CTX + D_MODEL] = out_ctx
    out_ref[0:B, COL_FW:COL_FW + D_MODEL] = fw
    out_ref[0:B, COL_AW:COL_AW + B * A] = agent_w


# ----------------------------------------------------------------------------
# Wrapper
# ----------------------------------------------------------------------------
def multilevel_attention_encoder(own_state, tasks, agvs, wbig, wsmall):
    bsz, t, _ = tasks.shape
    a = agvs.shape[1]
    tasks_flat = tasks.reshape(bsz * t, tasks.shape[-1])
    agvs_flat = agvs.reshape(bsz * a, agvs.shape[-1])

    vmem = lambda: pl.BlockSpec(memory_space=pltpu.MemorySpace.VMEM)
    slab = pl.pallas_call(
        encoder_kernel,
        out_shape=jax.ShapeDtypeStruct((OUT_ROWS, OUT_COLS), jnp.float32),
        in_specs=[vmem() for _ in range(5)],
        out_specs=vmem(),
    )(own_state, tasks_flat, agvs_flat, wbig, wsmall)

    context = slab[0:bsz, COL_CTX:COL_CTX + D_MODEL]
    fusion_weights = slab[0:bsz, COL_FW:COL_FW + D_MODEL]
    task_attention = jnp.stack(
        [slab[b * t:(b + 1) * t, COL_TASKW + b * t:COL_TASKW + (b + 1) * t]
         for b in range(bsz)])
    agent_attention = jnp.stack(
        [slab[b:b + 1, COL_AW + b * a:COL_AW + (b + 1) * a] for b in range(bsz)])

    return {
        "context": context,
        "task_attention": task_attention,
        "agent_attention": agent_attention,
        "fusion_weights": fusion_weights,
    }


# ----------------------------------------------------------------------------
# Pure-JAX reference (mirrors the PyTorch forward, eval mode)
# ----------------------------------------------------------------------------
def reference(own_state, tasks, agvs, p):
    own_emb = own_state @ p["w_agv"] + p["b_agv"]                     # (B, D)
    task_emb = tasks @ p["w_task"] + p["b_task"] + p["pe"][None]      # (B, T, D)
    agv_emb = agvs @ p["w_oagv"] + p["b_oagv"]                        # (B, A, D)

    def mha(q_in, kv_in, pre):
        q = q_in @ p[pre + "wq"] + p[pre + "bq"]
        k = kv_in @ p[pre + "wk"] + p[pre + "bk"]
        v = kv_in @ p[pre + "wv"] + p[pre + "bv"]
        b, l, _ = q.shape
        s_len = k.shape[1]
        qh = q.reshape(b, l, NUM_HEADS, HEAD_DIM).transpose(0, 2, 1, 3)
        kh = k.reshape(b, s_len, NUM_HEADS, HEAD_DIM).transpose(0, 2, 1, 3)
        vh = v.reshape(b, s_len, NUM_HEADS, HEAD_DIM).transpose(0, 2, 1, 3)
        s = jnp.einsum("bhld,bhsd->bhls", qh, kh) / math.sqrt(HEAD_DIM)
        w = jax.nn.softmax(s, axis=-1)
        o = jnp.einsum("bhls,bhsd->bhld", w, vh).transpose(0, 2, 1, 3)
        o = o.reshape(b, l, D_MODEL) @ p[pre + "wo"] + p[pre + "bo"]
        return o, w.mean(axis=1)

    task_att_out, task_w = mha(task_emb, task_emb, "t_")
    x = task_att_out + task_emb
    mean = jnp.mean(x, axis=-1, keepdims=True)
    var = jnp.mean((x - mean) ** 2, axis=-1, keepdims=True)
    task_norm = (x - mean) / jnp.sqrt(var + 1e-5) * p["ln_g"] + p["ln_b"]

    mask = (jnp.sum(tasks, axis=-1) != 0).astype(jnp.float32)[..., None]
    task_context = jnp.sum(task_norm * mask, axis=1) / jnp.maximum(
        jnp.sum(mask, axis=1), 1.0)

    agent_out, agent_w = mha(own_emb[:, None, :], agv_emb, "a_")
    agent_context = agent_out[:, 0, :]

    combined = jnp.concatenate([task_context, agent_context], axis=-1)
    fw = jax.nn.sigmoid(combined @ p["fg_w"] + p["fg_b"])
    final = fw * task_context + (1.0 - fw) * agent_context
    out = jnp.maximum(final @ p["out_w"] + p["out_b"], 0.0)
    return {"context": out, "task_attention": task_w,
            "agent_attention": agent_w, "fusion_weights": fw}


# ----------------------------------------------------------------------------
if __name__ == "__main__":
    key = jax.random.PRNGKey(0)
    kp, k1, k2, k3 = jax.random.split(key, 4)
    params = init_params(kp)
    wbig, wsmall = pack_params(params)

    own_state = jax.random.normal(k1, (B, 5), jnp.float32)
    tasks = jax.random.normal(k2, (B, T, 4), jnp.float32)
    tasks = tasks.at[:, T - 2:, :].set(0.0)   # padded (masked-out) task slots
    agvs = jax.random.normal(k3, (B, A, 2), jnp.float32)

    out = multilevel_attention_encoder(own_state, tasks, agvs, wbig, wsmall)
    jax.block_until_ready(out)

    ref = reference(own_state, tasks, agvs, params)
    for name in ("context", "task_attention", "agent_attention", "fusion_weights"):
        np.testing.assert_allclose(np.asarray(out[name]), np.asarray(ref[name]),
                                   atol=2e-2, rtol=2e-2)
    print("KERNEL_OK")
</pallas_src>

<mosaic_0001>
module attributes {stable_mosaic.version = 11 : i64} {
  func.func @encoder_kernel(%arg0: memref<2x5xf32, #tpu.memory_space<vmem>>, %arg1: memref<16x4xf32, #tpu.memory_space<vmem>>, %arg2: memref<8x2xf32, #tpu.memory_space<vmem>>, %arg3: memref<32x352xf32, #tpu.memory_space<vmem>>, %arg4: memref<41x32xf32, #tpu.memory_space<vmem>>, %arg5: memref<16x128xf32, #tpu.memory_space<vmem>>) attributes {dimension_semantics = [], scalar_prefetch = 0 : i64, scratch_operands = 0 : i64, tpu.core_type = #tpu.core_type<tc>} {
    %c0 = arith.constant 0 : index
    %c0_0 = arith.constant 0 : index
    %0 = vector.load %arg0[%c0, %c0_0] : memref<2x5xf32, #tpu.memory_space<vmem>>, vector<2x5xf32>
    %c0_1 = arith.constant 0 : index
    %c0_2 = arith.constant 0 : index
    %1 = vector.load %arg1[%c0_1, %c0_2] : memref<16x4xf32, #tpu.memory_space<vmem>>, vector<16x4xf32>
    %c0_3 = arith.constant 0 : index
    %c0_4 = arith.constant 0 : index
    %2 = vector.load %arg2[%c0_3, %c0_4] : memref<8x2xf32, #tpu.memory_space<vmem>>, vector<8x2xf32>
    %c0_5 = arith.constant 0 : index
    %c0_6 = arith.constant 0 : index
    %3 = vector.load %arg3[%c0_5, %c0_6] : memref<32x352xf32, #tpu.memory_space<vmem>>, vector<32x352xf32>
    %c0_7 = arith.constant 0 : index
    %c0_8 = arith.constant 0 : index
    %4 = vector.load %arg4[%c0_7, %c0_8] : memref<41x32xf32, #tpu.memory_space<vmem>>, vector<41x32xf32>
    %5 = vector.extract_strided_slice %4 {offsets = [14, 0], sizes = [5, 32], strides = [1, 1]} : vector<41x32xf32> to vector<5x32xf32>
    %cst = arith.constant dense<0.000000e+00> : vector<2x32xf32>
    %6 = tpu.matmul %0, %5, %cst {dimension_numbers = #tpu.dot_dimension_numbers<[1], [0], [0], [1], [0, 0, 1, 1], [], []>} : vector<2x5xf32>, vector<5x32xf32>, vector<2x32xf32> -> vector<2x32xf32>
    %7 = vector.extract_strided_slice %4 {offsets = [0, 0], sizes = [1, 32], strides = [1, 1]} : vector<41x32xf32> to vector<1x32xf32>
    %8 = vector.broadcast %7 : vector<1x32xf32> to vector<2x32xf32>
    %9 = arith.addf %6, %8 : vector<2x32xf32>
    %10 = vector.extract_strided_slice %4 {offsets = [19, 0], sizes = [4, 32], strides = [1, 1]} : vector<41x32xf32> to vector<4x32xf32>
    %cst_9 = arith.constant dense<0.000000e+00> : vector<16x32xf32>
    %11 = tpu.matmul %1, %10, %cst_9 {dimension_numbers = #tpu.dot_dimension_numbers<[1], [0], [0], [1], [0, 0, 1, 1], [], []>} : vector<16x4xf32>, vector<4x32xf32>, vector<16x32xf32> -> vector<16x32xf32>
    %12 = vector.extract_strided_slice %4 {offsets = [25, 0], sizes = [16, 32], strides = [1, 1]} : vector<41x32xf32> to vector<16x32xf32>
    %13 = arith.addf %11, %12 : vector<16x32xf32>
    %14 = vector.extract_strided_slice %4 {offsets = [23, 0], sizes = [2, 32], strides = [1, 1]} : vector<41x32xf32> to vector<2x32xf32>
    %cst_10 = arith.constant dense<0.000000e+00> : vector<8x32xf32>
    %15 = tpu.matmul %2, %14, %cst_10 {dimension_numbers = #tpu.dot_dimension_numbers<[1], [0], [0], [1], [0, 0, 1, 1], [], []>} : vector<8x2xf32>, vector<2x32xf32>, vector<8x32xf32> -> vector<8x32xf32>
    %16 = vector.extract_strided_slice %4 {offsets = [1, 0], sizes = [1, 32], strides = [1, 1]} : vector<41x32xf32> to vector<1x32xf32>
    %17 = vector.broadcast %16 : vector<1x32xf32> to vector<8x32xf32>
    %18 = arith.addf %15, %17 : vector<8x32xf32>
    %19 = vector.extract_strided_slice %3 {offsets = [0, 0], sizes = [32, 96], strides = [1, 1]} : vector<32x352xf32> to vector<32x96xf32>
    %cst_11 = arith.constant dense<0.000000e+00> : vector<16x96xf32>
    %20 = tpu.matmul %13, %19, %cst_11 {dimension_numbers = #tpu.dot_dimension_numbers<[1], [0], [0], [1], [0, 0, 1, 1], [], []>} : vector<16x32xf32>, vector<32x96xf32>, vector<16x96xf32> -> vector<16x96xf32>
    %21 = vector.extract_strided_slice %20 {offsets = [0, 0], sizes = [16, 32], strides = [1, 1]} : vector<16x96xf32> to vector<16x32xf32>
    %22 = vector.extract_strided_slice %4 {offsets = [2, 0], sizes = [1, 32], strides = [1, 1]} : vector<41x32xf32> to vector<1x32xf32>
    %23 = vector.broadcast %22 : vector<1x32xf32> to vector<16x32xf32>
    %24 = arith.addf %21, %23 : vector<16x32xf32>
    %25 = vector.extract_strided_slice %24 {offsets = [0, 0], sizes = [16, 8], strides = [1, 1]} : vector<16x32xf32> to vector<16x8xf32>
    %26 = vector.extract_strided_slice %24 {offsets = [0, 8], sizes = [16, 8], strides = [1, 1]} : vector<16x32xf32> to vector<16x8xf32>
    %27 = vector.extract_strided_slice %24 {offsets = [0, 16], sizes = [16, 8], strides = [1, 1]} : vector<16x32xf32> to vector<16x8xf32>
    %28 = vector.extract_strided_slice %24 {offsets = [0, 24], sizes = [16, 8], strides = [1, 1]} : vector<16x32xf32> to vector<16x8xf32>
    %29 = tpu.concatenate %25, %26, %27, %28 in 0 : vector<16x8xf32>, vector<16x8xf32>, vector<16x8xf32>, vector<16x8xf32> -> vector<64x8xf32>
    %30 = vector.extract_strided_slice %20 {offsets = [0, 32], sizes = [16, 32], strides = [1, 1]} : vector<16x96xf32> to vector<16x32xf32>
    %31 = vector.extract_strided_slice %4 {offsets = [3, 0], sizes = [1, 32], strides = [1, 1]} : vector<41x32xf32> to vector<1x32xf32>
    %32 = vector.broadcast %31 : vector<1x32xf32> to vector<16x32xf32>
    %33 = arith.addf %30, %32 : vector<16x32xf32>
    %34 = vector.extract_strided_slice %33 {offsets = [0, 0], sizes = [16, 8], strides = [1, 1]} : vector<16x32xf32> to vector<16x8xf32>
    %35 = vector.extract_strided_slice %33 {offsets = [0, 8], sizes = [16, 8], strides = [1, 1]} : vector<16x32xf32> to vector<16x8xf32>
    %36 = vector.extract_strided_slice %33 {offsets = [0, 16], sizes = [16, 8], strides = [1, 1]} : vector<16x32xf32> to vector<16x8xf32>
    %37 = vector.extract_strided_slice %33 {offsets = [0, 24], sizes = [16, 8], strides = [1, 1]} : vector<16x32xf32> to vector<16x8xf32>
    %38 = tpu.concatenate %34, %35, %36, %37 in 0 : vector<16x8xf32>, vector<16x8xf32>, vector<16x8xf32>, vector<16x8xf32> -> vector<64x8xf32>
    %39 = vector.extract_strided_slice %20 {offsets = [0, 64], sizes = [16, 32], strides = [1, 1]} : vector<16x96xf32> to vector<16x32xf32>
    %40 = vector.extract_strided_slice %4 {offsets = [4, 0], sizes = [1, 32], strides = [1, 1]} : vector<41x32xf32> to vector<1x32xf32>
    %41 = vector.broadcast %40 : vector<1x32xf32> to vector<16x32xf32>
    %42 = arith.addf %39, %41 : vector<16x32xf32>
    %43 = vector.extract_strided_slice %42 {offsets = [0, 0], sizes = [16, 8], strides = [1, 1]} : vector<16x32xf32> to vector<16x8xf32>
    %44 = vector.extract_strided_slice %42 {offsets = [0, 8], sizes = [16, 8], strides = [1, 1]} : vector<16x32xf32> to vector<16x8xf32>
    %45 = vector.extract_strided_slice %42 {offsets = [0, 16], sizes = [16, 8], strides = [1, 1]} : vector<16x32xf32> to vector<16x8xf32>
    %46 = vector.extract_strided_slice %42 {offsets = [0, 24], sizes = [16, 8], strides = [1, 1]} : vector<16x32xf32> to vector<16x8xf32>
    %47 = tpu.concatenate %43, %44, %45, %46 in 0 : vector<16x8xf32>, vector<16x8xf32>, vector<16x8xf32>, vector<16x8xf32> -> vector<64x8xf32>
    %cst_12 = arith.constant 0.353553385 : f32
    %48 = vector.broadcast %cst_12 : f32 to vector<64x8xf32>
    %49 = arith.mulf %29, %48 : vector<64x8xf32>
    %cst_13 = arith.constant dense<0.000000e+00> : vector<64x64xf32>
    %50 = tpu.matmul %49, %38, %cst_13 {dimension_numbers = #tpu.dot_dimension_numbers<[1], [1], [0], [0], [0, 0, 1, 0], [], []>} : vector<64x8xf32>, vector<64x8xf32>, vector<64x64xf32> -> vector<64x64xf32>
    %51 = tpu.iota {dimensions = array<i32: 0>} : vector<64x64xi32>
    %52 = tpu.iota {dimensions = array<i32: 1>} : vector<64x64xi32>
    %c3_i32 = arith.constant 3 : i32
    %53 = vector.broadcast %c3_i32 : i32 to vector<64x64xi32>
    %54 = arith.shrsi %51, %53 : vector<64x64xi32>
    %c3_i32_14 = arith.constant 3 : i32
    %55 = vector.broadcast %c3_i32_14 : i32 to vector<64x64xi32>
    %56 = arith.shrsi %52, %55 : vector<64x64xi32>
    %57 = arith.cmpi eq, %54, %56 : vector<64x64xi32>
    %cst_15 = arith.constant -1.000000e+30 : f32
    %58 = vector.broadcast %cst_15 : f32 to vector<64x64xf32>
    %59 = arith.select %57, %50, %58 : vector<64x64xi1>, vector<64x64xf32>
    %cst_16 = arith.constant dense<0xFF800000> : vector<64xf32>
    %60 = vector.multi_reduction <maximumf>, %59, %cst_16 [1] : vector<64x64xf32> to vector<64xf32>
    %61 = vector.shape_cast %60 : vector<64xf32> to vector<64x1xf32>
    %62 = vector.broadcast %61 : vector<64x1xf32> to vector<64x64xf32>
    %63 = arith.subf %59, %62 : vector<64x64xf32>
    %64 = math.exp %63 : vector<64x64xf32>
    %cst_17 = arith.constant dense<0.000000e+00> : vector<64xf32>
    %65 = vector.multi_reduction <add>, %64, %cst_17 [1] : vector<64x64xf32> to vector<64xf32>
    %66 = vector.shape_cast %65 : vector<64xf32> to vector<64x1xf32>
    %67 = tpu.reciprocal %66 {approx = true} : vector<64x1xf32> -> vector<64x1xf32>
    %68 = vector.broadcast %67 : vector<64x1xf32> to vector<64x64xf32>
    %69 = arith.mulf %64, %68 : vector<64x64xf32>
    %cst_18 = arith.constant dense<0.000000e+00> : vector<64x8xf32>
    %70 = tpu.matmul %69, %47, %cst_18 {dimension_numbers = #tpu.dot_dimension_numbers<[1], [0], [0], [1], [0, 0, 1, 1], [], []>} : vector<64x64xf32>, vector<64x8xf32>, vector<64x8xf32> -> vector<64x8xf32>
    %71 = vector.extract_strided_slice %70 {offsets = [0, 0], sizes = [16, 8], strides = [1, 1]} : vector<64x8xf32> to vector<16x8xf32>
    %72 = vector.extract_strided_slice %70 {offsets = [16, 0], sizes = [16, 8], strides = [1, 1]} : vector<64x8xf32> to vector<16x8xf32>
    %73 = vector.extract_strided_slice %70 {offsets = [32, 0], sizes = [16, 8], strides = [1, 1]} : vector<64x8xf32> to vector<16x8xf32>
    %74 = vector.extract_strided_slice %70 {offsets = [48, 0], sizes = [16, 8], strides = [1, 1]} : vector<64x8xf32> to vector<16x8xf32>
    %75 = tpu.concatenate %71, %72, %73, %74 in 1 : vector<16x8xf32>, vector<16x8xf32>, vector<16x8xf32>, vector<16x8xf32> -> vector<16x32xf32>
    %76 = vector.extract_strided_slice %3 {offsets = [0, 96], sizes = [32, 32], strides = [1, 1]} : vector<32x352xf32> to vector<32x32xf32>
    %cst_19 = arith.constant dense<0.000000e+00> : vector<16x32xf32>
    %77 = tpu.matmul %75, %76, %cst_19 {dimension_numbers = #tpu.dot_dimension_numbers<[1], [0], [0], [1], [0, 0, 1, 1], [], []>} : vector<16x32xf32>, vector<32x32xf32>, vector<16x32xf32> -> vector<16x32xf32>
    %78 = vector.extract_strided_slice %4 {offsets = [5, 0], sizes = [1, 32], strides = [1, 1]} : vector<41x32xf32> to vector<1x32xf32>
    %79 = vector.broadcast %78 : vector<1x32xf32> to vector<16x32xf32>
    %80 = arith.addf %77, %79 : vector<16x32xf32>
    %81 = vector.extract_strided_slice %69 {offsets = [0, 0], sizes = [16, 16], strides = [1, 1]} : vector<64x64xf32> to vector<16x16xf32>
    %82 = vector.extract_strided_slice %69 {offsets = [16, 16], sizes = [16, 16], strides = [1, 1]} : vector<64x64xf32> to vector<16x16xf32>
    %83 = arith.addf %81, %82 : vector<16x16xf32>
    %84 = vector.extract_strided_slice %69 {offsets = [32, 32], sizes = [16, 16], strides = [1, 1]} : vector<64x64xf32> to vector<16x16xf32>
    %85 = arith.addf %83, %84 : vector<16x16xf32>
    %86 = vector.extract_strided_slice %69 {offsets = [48, 48], sizes = [16, 16], strides = [1, 1]} : vector<64x64xf32> to vector<16x16xf32>
    %87 = arith.addf %85, %86 : vector<16x16xf32>
    %cst_20 = arith.constant 2.500000e-01 : f32
    %88 = vector.broadcast %cst_20 : f32 to vector<16x16xf32>
    %89 = arith.mulf %87, %88 : vector<16x16xf32>
    %90 = arith.addf %80, %13 : vector<16x32xf32>
    %cst_21 = arith.constant dense<0.000000e+00> : vector<16xf32>
    %91 = vector.multi_reduction <add>, %90, %cst_21 [1] : vector<16x32xf32> to vector<16xf32>
    %92 = vector.shape_cast %91 : vector<16xf32> to vector<16x1xf32>
    %cst_22 = arith.constant 3.200000e+01 : f32
    %93 = vector.broadcast %cst_22 : f32 to vector<16x1xf32>
    %94 = arith.divf %92, %93 : vector<16x1xf32>
    %95 = vector.broadcast %94 : vector<16x1xf32> to vector<16x32xf32>
    %96 = arith.subf %90, %95 : vector<16x32xf32>
    %97 = arith.mulf %96, %96 : vector<16x32xf32>
    %cst_23 = arith.constant dense<0.000000e+00> : vector<16xf32>
    %98 = vector.multi_reduction <add>, %97, %cst_23 [1] : vector<16x32xf32> to vector<16xf32>
    %99 = vector.shape_cast %98 : vector<16xf32> to vector<16x1xf32>
    %cst_24 = arith.constant 3.200000e+01 : f32
    %100 = vector.broadcast %cst_24 : f32 to vector<16x1xf32>
    %101 = arith.divf %99, %100 : vector<16x1xf32>
    %cst_25 = arith.constant 9.99999974E-6 : f32
    %102 = vector.broadcast %cst_25 : f32 to vector<16x1xf32>
    %103 = arith.addf %101, %102 : vector<16x1xf32>
    %104 = math.rsqrt %103 : vector<16x1xf32>
    %105 = vector.broadcast %104 : vector<16x1xf32> to vector<16x32xf32>
    %106 = arith.mulf %96, %105 : vector<16x32xf32>
    %107 = vector.extract_strided_slice %4 {offsets = [10, 0], sizes = [1, 32], strides = [1, 1]} : vector<41x32xf32> to vector<1x32xf32>
    %108 = vector.broadcast %107 : vector<1x32xf32> to vector<16x32xf32>
    %109 = arith.mulf %106, %108 : vector<16x32xf32>
    %110 = vector.extract_strided_slice %4 {offsets = [11, 0], sizes = [1, 32], strides = [1, 1]} : vector<41x32xf32> to vector<1x32xf32>
    %111 = vector.broadcast %110 : vector<1x32xf32> to vector<16x32xf32>
    %112 = arith.addf %109, %111 : vector<16x32xf32>
    %cst_26 = arith.constant dense<0.000000e+00> : vector<16xf32>
    %113 = vector.multi_reduction <add>, %1, %cst_26 [1] : vector<16x4xf32> to vector<16xf32>
    %114 = vector.shape_cast %113 : vector<16xf32> to vector<16x1xf32>
    %cst_27 = arith.constant 0.000000e+00 : f32
    %115 = vector.broadcast %cst_27 : f32 to vector<16x1xf32>
    %116 = arith.cmpf one, %114, %115 : vector<16x1xf32>
    %117 = arith.extui %116 : vector<16x1xi1> to vector<16x1xi32>
    %118 = arith.sitofp %117 : vector<16x1xi32> to vector<16x1xf32>
    %119 = vector.broadcast %118 : vector<16x1xf32> to vector<16x32xf32>
    %120 = arith.mulf %112, %119 : vector<16x32xf32>
    %121 = vector.extract_strided_slice %120 {offsets = [0, 0], sizes = [8, 32], strides = [1, 1]} : vector<16x32xf32> to vector<8x32xf32>
    %cst_28 = arith.constant dense<0.000000e+00> : vector<32xf32>
    %122 = vector.multi_reduction <add>, %121, %cst_28 [0] : vector<8x32xf32> to vector<32xf32>
    %123 = vector.shape_cast %122 : vector<32xf32> to vector<1x32xf32>
    %124 = vector.extract_strided_slice %118 {offsets = [0, 0], sizes = [8, 1], strides = [1, 1]} : vector<16x1xf32> to vector<8x1xf32>
    %cst_29 = arith.constant dense<0.000000e+00> : vector<1xf32>
    %125 = vector.multi_reduction <add>, %124, %cst_29 [0] : vector<8x1xf32> to vector<1xf32>
    %126 = vector.shape_cast %125 : vector<1xf32> to vector<1x1xf32>
    %127 = vector.extract_strided_slice %120 {offsets = [8, 0], sizes = [8, 32], strides = [1, 1]} : vector<16x32xf32> to vector<8x32xf32>
    %cst_30 = arith.constant dense<0.000000e+00> : vector<32xf32>
    %128 = vector.multi_reduction <add>, %127, %cst_30 [0] : vector<8x32xf32> to vector<32xf32>
    %129 = vector.shape_cast %128 : vector<32xf32> to vector<1x32xf32>
    %130 = vector.extract_strided_slice %118 {offsets = [8, 0], sizes = [8, 1], strides = [1, 1]} : vector<16x1xf32> to vector<8x1xf32>
    %cst_31 = arith.constant dense<0.000000e+00> : vector<1xf32>
    %131 = vector.multi_reduction <add>, %130, %cst_31 [0] : vector<8x1xf32> to vector<1xf32>
    %132 = vector.shape_cast %131 : vector<1xf32> to vector<1x1xf32>
    %133 = tpu.concatenate %123, %129 in 0 : vector<1x32xf32>, vector<1x32xf32> -> vector<2x32xf32>
    %134 = tpu.concatenate %126, %132 in 0 : vector<1x1xf32>, vector<1x1xf32> -> vector<2x1xf32>
    %cst_32 = arith.constant 1.000000e+00 : f32
    %135 = vector.broadcast %cst_32 : f32 to vector<2x1xf32>
    %136 = arith.maximumf %134, %135 : vector<2x1xf32>
    %137 = tpu.reciprocal %136 {approx = true} : vector<2x1xf32> -> vector<2x1xf32>
    %138 = vector.broadcast %137 : vector<2x1xf32> to vector<2x32xf32>
    %139 = arith.mulf %133, %138 : vector<2x32xf32>
    %140 = vector.extract_strided_slice %3 {offsets = [0, 128], sizes = [32, 32], strides = [1, 1]} : vector<32x352xf32> to vector<32x32xf32>
    %cst_33 = arith.constant dense<0.000000e+00> : vector<2x32xf32>
    %141 = tpu.matmul %9, %140, %cst_33 {dimension_numbers = #tpu.dot_dimension_numbers<[1], [0], [0], [1], [0, 0, 1, 1], [], []>} : vector<2x32xf32>, vector<32x32xf32>, vector<2x32xf32> -> vector<2x32xf32>
    %142 = vector.extract_strided_slice %4 {offsets = [6, 0], sizes = [1, 32], strides = [1, 1]} : vector<41x32xf32> to vector<1x32xf32>
    %143 = vector.broadcast %142 : vector<1x32xf32> to vector<2x32xf32>
    %144 = arith.addf %141, %143 : vector<2x32xf32>
    %145 = vector.extract_strided_slice %144 {offsets = [0, 0], sizes = [2, 8], strides = [1, 1]} : vector<2x32xf32> to vector<2x8xf32>
    %146 = vector.extract_strided_slice %144 {offsets = [0, 8], sizes = [2, 8], strides = [1, 1]} : vector<2x32xf32> to vector<2x8xf32>
    %147 = vector.extract_strided_slice %144 {offsets = [0, 16], sizes = [2, 8], strides = [1, 1]} : vector<2x32xf32> to vector<2x8xf32>
    %148 = vector.extract_strided_slice %144 {offsets = [0, 24], sizes = [2, 8], strides = [1, 1]} : vector<2x32xf32> to vector<2x8xf32>
    %149 = tpu.concatenate %145, %146, %147, %148 in 0 : vector<2x8xf32>, vector<2x8xf32>, vector<2x8xf32>, vector<2x8xf32> -> vector<8x8xf32>
    %150 = vector.extract_strided_slice %3 {offsets = [0, 160], sizes = [32, 64], strides = [1, 1]} : vector<32x352xf32> to vector<32x64xf32>
    %cst_34 = arith.constant dense<0.000000e+00> : vector<8x64xf32>
    %151 = tpu.matmul %18, %150, %cst_34 {dimension_numbers = #tpu.dot_dimension_numbers<[1], [0], [0], [1], [0, 0, 1, 1], [], []>} : vector<8x32xf32>, vector<32x64xf32>, vector<8x64xf32> -> vector<8x64xf32>
    %152 = vector.extract_strided_slice %151 {offsets = [0, 0], sizes = [8, 32], strides = [1, 1]} : vector<8x64xf32> to vector<8x32xf32>
    %153 = vector.extract_strided_slice %4 {offsets = [7, 0], sizes = [1, 32], strides = [1, 1]} : vector<41x32xf32> to vector<1x32xf32>
    %154 = vector.broadcast %153 : vector<1x32xf32> to vector<8x32xf32>
    %155 = arith.addf %152, %154 : vector<8x32xf32>
    %156 = vector.extract_strided_slice %155 {offsets = [0, 0], sizes = [8, 8], strides = [1, 1]} : vector<8x32xf32> to vector<8x8xf32>
    %157 = vector.extract_strided_slice %155 {offsets = [0, 8], sizes = [8, 8], strides = [1, 1]} : vector<8x32xf32> to vector<8x8xf32>
    %158 = vector.extract_strided_slice %155 {offsets = [0, 16], sizes = [8, 8], strides = [1, 1]} : vector<8x32xf32> to vector<8x8xf32>
    %159 = vector.extract_strided_slice %155 {offsets = [0, 24], sizes = [8, 8], strides = [1, 1]} : vector<8x32xf32> to vector<8x8xf32>
    %160 = tpu.concatenate %156, %157, %158, %159 in 0 : vector<8x8xf32>, vector<8x8xf32>, vector<8x8xf32>, vector<8x8xf32> -> vector<32x8xf32>
    %161 = vector.extract_strided_slice %151 {offsets = [0, 32], sizes = [8, 32], strides = [1, 1]} : vector<8x64xf32> to vector<8x32xf32>
    %162 = vector.extract_strided_slice %4 {offsets = [8, 0], sizes = [1, 32], strides = [1, 1]} : vector<41x32xf32> to vector<1x32xf32>
    %163 = vector.broadcast %162 : vector<1x32xf32> to vector<8x32xf32>
    %164 = arith.addf %161, %163 : vector<8x32xf32>
    %165 = vector.extract_strided_slice %164 {offsets = [0, 0], sizes = [8, 8], strides = [1, 1]} : vector<8x32xf32> to vector<8x8xf32>
    %166 = vector.extract_strided_slice %164 {offsets = [0, 8], sizes = [8, 8], strides = [1, 1]} : vector<8x32xf32> to vector<8x8xf32>
    %167 = vector.extract_strided_slice %164 {offsets = [0, 16], sizes = [8, 8], strides = [1, 1]} : vector<8x32xf32> to vector<8x8xf32>
    %168 = vector.extract_strided_slice %164 {offsets = [0, 24], sizes = [8, 8], strides = [1, 1]} : vector<8x32xf32> to vector<8x8xf32>
    %169 = tpu.concatenate %165, %166, %167, %168 in 0 : vector<8x8xf32>, vector<8x8xf32>, vector<8x8xf32>, vector<8x8xf32> -> vector<32x8xf32>
    %cst_35 = arith.constant 0.353553385 : f32
    %170 = vector.broadcast %cst_35 : f32 to vector<8x8xf32>
    %171 = arith.mulf %149, %170 : vector<8x8xf32>
    %cst_36 = arith.constant dense<0.000000e+00> : vector<8x32xf32>
    %172 = tpu.matmul %171, %160, %cst_36 {dimension_numbers = #tpu.dot_dimension_numbers<[1], [1], [0], [0], [0, 0, 1, 0], [], []>} : vector<8x8xf32>, vector<32x8xf32>, vector<8x32xf32> -> vector<8x32xf32>
    %173 = tpu.iota {dimensions = array<i32: 0>} : vector<8x32xi32>
    %174 = tpu.iota {dimensions = array<i32: 1>} : vector<8x32xi32>
    %c2_i32 = arith.constant 2 : i32
    %175 = vector.broadcast %c2_i32 : i32 to vector<8x32xi32>
    %176 = arith.shrsi %174, %175 : vector<8x32xi32>
    %177 = arith.cmpi eq, %173, %176 : vector<8x32xi32>
    %cst_37 = arith.constant -1.000000e+30 : f32
    %178 = vector.broadcast %cst_37 : f32 to vector<8x32xf32>
    %179 = arith.select %177, %172, %178 : vector<8x32xi1>, vector<8x32xf32>
    %cst_38 = arith.constant dense<0xFF800000> : vector<8xf32>
    %180 = vector.multi_reduction <maximumf>, %179, %cst_38 [1] : vector<8x32xf32> to vector<8xf32>
    %181 = vector.shape_cast %180 : vector<8xf32> to vector<8x1xf32>
    %182 = vector.broadcast %181 : vector<8x1xf32> to vector<8x32xf32>
    %183 = arith.subf %179, %182 : vector<8x32xf32>
    %184 = math.exp %183 : vector<8x32xf32>
    %cst_39 = arith.constant dense<0.000000e+00> : vector<8xf32>
    %185 = vector.multi_reduction <add>, %184, %cst_39 [1] : vector<8x32xf32> to vector<8xf32>
    %186 = vector.shape_cast %185 : vector<8xf32> to vector<8x1xf32>
    %187 = tpu.reciprocal %186 {approx = true} : vector<8x1xf32> -> vector<8x1xf32>
    %188 = vector.broadcast %187 : vector<8x1xf32> to vector<8x32xf32>
    %189 = arith.mulf %184, %188 : vector<8x32xf32>
    %cst_40 = arith.constant dense<0.000000e+00> : vector<8x8xf32>
    %190 = tpu.matmul %189, %169, %cst_40 {dimension_numbers = #tpu.dot_dimension_numbers<[1], [0], [0], [1], [0, 0, 1, 1], [], []>} : vector<8x32xf32>, vector<32x8xf32>, vector<8x8xf32> -> vector<8x8xf32>
    %191 = vector.extract_strided_slice %190 {offsets = [0, 0], sizes = [2, 8], strides = [1, 1]} : vector<8x8xf32> to vector<2x8xf32>
    %192 = vector.extract_strided_slice %190 {offsets = [2, 0], sizes = [2, 8], strides = [1, 1]} : vector<8x8xf32> to vector<2x8xf32>
    %193 = vector.extract_strided_slice %190 {offsets = [4, 0], sizes = [2, 8], strides = [1, 1]} : vector<8x8xf32> to vector<2x8xf32>
    %194 = vector.extract_strided_slice %190 {offsets = [6, 0], sizes = [2, 8], strides = [1, 1]} : vector<8x8xf32> to vector<2x8xf32>
    %195 = tpu.concatenate %191, %192, %193, %194 in 1 : vector<2x8xf32>, vector<2x8xf32>, vector<2x8xf32>, vector<2x8xf32> -> vector<2x32xf32>
    %196 = vector.extract_strided_slice %3 {offsets = [0, 224], sizes = [32, 32], strides = [1, 1]} : vector<32x352xf32> to vector<32x32xf32>
    %cst_41 = arith.constant dense<0.000000e+00> : vector<2x32xf32>
    %197 = tpu.matmul %195, %196, %cst_41 {dimension_numbers = #tpu.dot_dimension_numbers<[1], [0], [0], [1], [0, 0, 1, 1], [], []>} : vector<2x32xf32>, vector<32x32xf32>, vector<2x32xf32> -> vector<2x32xf32>
    %198 = vector.extract_strided_slice %4 {offsets = [9, 0], sizes = [1, 32], strides = [1, 1]} : vector<41x32xf32> to vector<1x32xf32>
    %199 = vector.broadcast %198 : vector<1x32xf32> to vector<2x32xf32>
    %200 = arith.addf %197, %199 : vector<2x32xf32>
    %201 = vector.extract_strided_slice %189 {offsets = [0, 0], sizes = [2, 8], strides = [1, 1]} : vector<8x32xf32> to vector<2x8xf32>
    %202 = vector.extract_strided_slice %189 {offsets = [2, 8], sizes = [2, 8], strides = [1, 1]} : vector<8x32xf32> to vector<2x8xf32>
    %203 = arith.addf %201, %202 : vector<2x8xf32>
    %204 = vector.extract_strided_slice %189 {offsets = [4, 16], sizes = [2, 8], strides = [1, 1]} : vector<8x32xf32> to vector<2x8xf32>
    %205 = arith.addf %203, %204 : vector<2x8xf32>
    %206 = vector.extract_strided_slice %189 {offsets = [6, 24], sizes = [2, 8], strides = [1, 1]} : vector<8x32xf32> to vector<2x8xf32>
    %207 = arith.addf %205, %206 : vector<2x8xf32>
    %cst_42 = arith.constant 2.500000e-01 : f32
    %208 = vector.broadcast %cst_42 : f32 to vector<2x8xf32>
    %209 = arith.mulf %207, %208 : vector<2x8xf32>
    %210 = vector.extract_strided_slice %3 {offsets = [0, 256], sizes = [32, 32], strides = [1, 1]} : vector<32x352xf32> to vector<32x32xf32>
    %cst_43 = arith.constant dense<0.000000e+00> : vector<2x32xf32>
    %211 = tpu.matmul %139, %210, %cst_43 {dimension_numbers = #tpu.dot_dimension_numbers<[1], [0], [0], [1], [0, 0, 1, 1], [], []>} : vector<2x32xf32>, vector<32x32xf32>, vector<2x32xf32> -> vector<2x32xf32>
    %212 = vector.extract_strided_slice %3 {offsets = [0, 288], sizes = [32, 32], strides = [1, 1]} : vector<32x352xf32> to vector<32x32xf32>
    %cst_44 = arith.constant dense<0.000000e+00> : vector<2x32xf32>
    %213 = tpu.matmul %200, %212, %cst_44 {dimension_numbers = #tpu.dot_dimension_numbers<[1], [0], [0], [1], [0, 0, 1, 1], [], []>} : vector<2x32xf32>, vector<32x32xf32>, vector<2x32xf32> -> vector<2x32xf32>
    %214 = arith.addf %211, %213 : vector<2x32xf32>
    %215 = vector.extract_strided_slice %4 {offsets = [12, 0], sizes = [1, 32], strides = [1, 1]} : vector<41x32xf32> to vector<1x32xf32>
    %216 = vector.broadcast %215 : vector<1x32xf32> to vector<2x32xf32>
    %217 = arith.addf %214, %216 : vector<2x32xf32>
    %218 = arith.negf %217 : vector<2x32xf32>
    %219 = math.exp %218 : vector<2x32xf32>
    %cst_45 = arith.constant 1.000000e+00 : f32
    %220 = vector.broadcast %cst_45 : f32 to vector<2x32xf32>
    %221 = arith.addf %220, %219 : vector<2x32xf32>
    %222 = arith.divf %220, %221 : vector<2x32xf32>
    %223 = arith.mulf %222, %139 : vector<2x32xf32>
    %cst_46 = arith.constant 1.000000e+00 : f32
    %224 = vector.broadcast %cst_46 : f32 to vector<2x32xf32>
    %225 = arith.subf %224, %222 : vector<2x32xf32>
    %226 = arith.mulf %225, %200 : vector<2x32xf32>
    %227 = arith.addf %223, %226 : vector<2x32xf32>
    %228 = vector.extract_strided_slice %3 {offsets = [0, 320], sizes = [32, 32], strides = [1, 1]} : vector<32x352xf32> to vector<32x32xf32>
    %cst_47 = arith.constant dense<0.000000e+00> : vector<2x32xf32>
    %229 = tpu.matmul %227, %228, %cst_47 {dimension_numbers = #tpu.dot_dimension_numbers<[1], [0], [0], [1], [0, 0, 1, 1], [], []>} : vector<2x32xf32>, vector<32x32xf32>, vector<2x32xf32> -> vector<2x32xf32>
    %230 = vector.extract_strided_slice %4 {offsets = [13, 0], sizes = [1, 32], strides = [1, 1]} : vector<41x32xf32> to vector<1x32xf32>
    %231 = vector.broadcast %230 : vector<1x32xf32> to vector<2x32xf32>
    %232 = arith.addf %229, %231 : vector<2x32xf32>
    %cst_48 = arith.constant 0.000000e+00 : f32
    %233 = vector.broadcast %cst_48 : f32 to vector<2x32xf32>
    %234 = arith.maximumf %232, %233 : vector<2x32xf32>
    %cst_49 = arith.constant 0.000000e+00 : f32
    %235 = vector.broadcast %cst_49 : f32 to vector<16x128xf32>
    %c0_50 = arith.constant 0 : index
    %c0_51 = arith.constant 0 : index
    %236 = vector.load %arg5[%c0_50, %c0_51] : memref<16x128xf32, #tpu.memory_space<vmem>>, vector<16x128xf32>
    tpu.vector_store %arg5[%c0_50, %c0_51], %235 {strides = array<i32>} : memref<16x128xf32, #tpu.memory_space<vmem>>, vector<16x128xf32>,
    %c0_52 = arith.constant 0 : index
    %c0_53 = arith.constant 0 : index
    %237 = vector.load %arg5[%c0_52, %c0_53] : memref<16x128xf32, #tpu.memory_space<vmem>>, vector<16x16xf32>
    tpu.vector_store %arg5[%c0_52, %c0_53], %89 {strides = array<i32>} : memref<16x128xf32, #tpu.memory_space<vmem>>, vector<16x16xf32>,
    %c0_54 = arith.constant 0 : index
    %c16 = arith.constant 16 : index
    %238 = vector.load %arg5[%c0_54, %c16] : memref<16x128xf32, #tpu.memory_space<vmem>>, vector<2x32xf32>
    tpu.vector_store %arg5[%c0_54, %c16], %234 {strides = array<i32>} : memref<16x128xf32, #tpu.memory_space<vmem>>, vector<2x32xf32>,
    %c0_55 = arith.constant 0 : index
    %c48 = arith.constant 48 : index
    %239 = vector.load %arg5[%c0_55, %c48] : memref<16x128xf32, #tpu.memory_space<vmem>>, vector<2x32xf32>
    tpu.vector_store %arg5[%c0_55, %c48], %222 {strides = array<i32>} : memref<16x128xf32, #tpu.memory_space<vmem>>, vector<2x32xf32>,
    %c0_56 = arith.constant 0 : index
    %c80 = arith.constant 80 : index
    %240 = vector.load %arg5[%c0_56, %c80] : memref<16x128xf32, #tpu.memory_space<vmem>>, vector<2x8xf32>
    tpu.vector_store %arg5[%c0_56, %c80], %209 {strides = array<i32>} : memref<16x128xf32, #tpu.memory_space<vmem>>, vector<2x8xf32>,
    return
  }
}

</mosaic_0001>

<llo_original>
// kernel: tpu_custom_call.1
$region0: #{tpu_custom_call.1}
  #allocation0 [shape = 'u32[]', space=smem, size = 0x4, offset = 0x4, fixed_abs, tag = 'smem constant byte address 0x4 - core index']
  #allocation1 [shape = 'u32[144,128]{1,0:T(1,128)}', space=vmem, size = 0x12000, scoped, tag = 'internal scratch']
  %s0 = inlined_call_operand.vmem [shape: f32[2,5], index: 0, kind: input, shape index: {}]
  %s1 = inlined_call_operand.vmem [shape: f32[16,4], index: 1, kind: input, shape index: {}]
  %s2 = inlined_call_operand.vmem [shape: f32[8,2], index: 2, kind: input, shape index: {}]
  %s3 = inlined_call_operand.vmem [shape: f32[32,352], index: 3, kind: input, shape index: {}]
  %s4 = inlined_call_operand.vmem [shape: f32[41,32], index: 4, kind: input, shape index: {}]
  %s5 = inlined_call_operand.hbm [shape: f32[16,128], index: 5, kind: output, shape index: {}]
  %s6 = sld [smem:[#allocation0]]
  $region30: #{tpu_custom_call.1} parent=0
    _
  %s8 = ssub.s32 1, %s6
  %s9 = scalar_select 0, %s8, %s6
  $region1: #{tpu_custom_call.1} parent=0
    #allocation2 [shape = 'u8[8192]{0}', space=vmem, size = 0x2000, scoped, tag = 'output window, operand 0, single buffered']
    #allocation3 [shape = 's32[1]{0}', space=sflag, size = 0x4, scoped, tag = 'scoped memory for tpu_custom_call.1']
    %10 = vsyncpa [#allocation3], 0
    // Predicated region
    $region2: #{tpu_custom_call.1} parent=1 // pred_check
      _
    $region3: #{tpu_custom_call.1} parent=1 // pred_check_branch
      %12 = sbr.rel (0) target = $region5
    $region4: #{tpu_custom_call.1} parent=1 // pred_region
      _
    $region5: #{tpu_custom_call.1} parent=1 // pred_fallthru
      _
    // Predicated region
    $region6: #{tpu_custom_call.1} parent=1 // pred_check
      _
    $region7: #{tpu_custom_call.1} parent=1 // pred_check_branch
      %14 = sbr.rel (0) target = $region9
    $region8: #{tpu_custom_call.1} parent=1 // pred_region
      _
    $region9: #{tpu_custom_call.1} parent=1 // pred_fallthru
      _
    // Predicated region
    $region10: #{tpu_custom_call.1} parent=1 // pred_check
      _
    $region11: #{tpu_custom_call.1} parent=1 // pred_check_branch
      %16 = sbr.rel (0) target = $region13
    $region12: #{tpu_custom_call.1} parent=1 // pred_region
      _
    $region13: #{tpu_custom_call.1} parent=1 // pred_fallthru
      _
    // Predicated region
    $region14: #{tpu_custom_call.1} parent=1 // pred_check
      _
    $region15: #{tpu_custom_call.1} parent=1 // pred_check_branch
      %18 = sbr.rel (0) target = $region17
    $region16: #{tpu_custom_call.1} parent=1 // pred_region
      _
    $region17: #{tpu_custom_call.1} parent=1 // pred_fallthru
      _
    // Predicated region
    $region18: #{tpu_custom_call.1} parent=1 // pred_check
      _
    $region19: #{tpu_custom_call.1} parent=1 // pred_check_branch
      %20 = sbr.rel (0) target = $region21
    $region20: #{tpu_custom_call.1} parent=1 // pred_region
      _
    $region21: #{tpu_custom_call.1} parent=1 // pred_fallthru
      _
    %v21 = vld [vmem:[%s0] sm:$0x3]
    %v22 = vld [vmem:[%s1] sm:$0xff]
    %v23 = vld [vmem:[%s1 + $0x8] sm:$0xff]
    %v24 = vld [vmem:[%s2] sm:$0xff]
    %v25 = vld [vmem:[%s3] sm:$0xff]
    %v26 = vld [vmem:[%s3 + $0x8] sm:$0xff]
    %v27 = vld [vmem:[%s3 + $0x10] sm:$0xff]
    %v28 = vld [vmem:[%s3 + $0x18] sm:$0xff]
    %v29 = vld [vmem:[%s3 + $0x20] sm:$0xff]
    %v30 = vld [vmem:[%s3 + $0x28] sm:$0xff]
    %v31 = vld [vmem:[%s3 + $0x30] sm:$0xff]
    %v32 = vld [vmem:[%s3 + $0x38] sm:$0xff]
    %v33 = vld [vmem:[%s3 + $0x40] sm:$0xff]
    %v34 = vld [vmem:[%s3 + $0x48] sm:$0xff]
    %v35 = vld [vmem:[%s3 + $0x50] sm:$0xff]
    %v36 = vld [vmem:[%s3 + $0x58] sm:$0xff]
    %v37 = vld [vmem:[%s4] sm:$0xff]
    %v38 = vld [vmem:[%s4 + $0x8] sm:$0xff]
    %v39 = vld [vmem:[%s4 + $0x10] sm:$0xff]
    %v40 = vld [vmem:[%s4 + $0x18] sm:$0xff]
    %v41 = vld [vmem:[%s4 + $0x20] sm:$0xff]
    %v42 = vld [vmem:[%s4 + $0x28] sm:$0x1]
    %v43 = vlaneseq
    %v44 = vshrl.u32 %v43, 7
    %v45 = vsub.s32 0, %v44
    %v46 = vrot.slane %v37, %v45
    %vm49 = vcmask 1041408
    %v50 = vrot.slane %v38, 6
    %v51 = vrot.slane %v39, 6
    %v52 = vsel %vm49, %v50, %v51
    %vm53 = vcmask 39936
    %v55 = vsel %vm53, %v21, 0
    %vm57 = vcmask 1044480
    %v58 = vsel %vm57, %v52, 0
    %60 = vmatprep.subr.mxu0 0.0
    %61 = vmatpush1.msra.mxu0 %v58
    %62 = vmatprep.subr.mxu0 0.0
    %63 = vmatpush1.msra.mxu0 0.0
    %64 = vmatprep.subr.mxu0 0.0
    %65 = vmatpush1.msra.mxu0 0.0
    %66 = vmatprep.subr.mxu0 0.0
    %67 = vmatpush1.msra.mxu0 0.0
    %68 = vmatprep.subr.mxu0 0.0
    %69 = vmatpush1.msra.mxu0 0.0
    %70 = vmatprep.subr.mxu0 0.0
    %71 = vmatpush1.msra.mxu0 0.0
    %72 = vmatprep.subr.mxu0 0.0
    %73 = vmatpush1.msra.mxu0 0.0
    %74 = vmatprep.subr.mxu0 0.0
    %75 = vmatpush1.msra.mxu0 0.0
    %76 = vmatprep.subr.mxu0 0.0
    %77 = vmatpush1.msra.mxu0 0.0
    %78 = vmatprep.subr.mxu0 0.0
    %79 = vmatpush1.msra.mxu0 0.0
    %80 = vmatprep.subr.mxu0 0.0
    %81 = vmatpush1.msra.mxu0 0.0
    %82 = vmatprep.subr.mxu0 0.0
    %83 = vmatpush1.msra.mxu0 0.0
    %84 = vmatprep.subr.mxu0 0.0
    %85 = vmatpush1.msra.mxu0 0.0
    %86 = vmatprep.subr.mxu0 0.0
    %87 = vmatpush1.msra.mxu0 0.0
    %88 = vmatprep.subr.mxu0 0.0
    %89 = vmatpush1.msra.mxu0 0.0
    %90 = vmatprep.subr.mxu0 0.0
    %91 = vmatpush1.msra.mxu0 0.0
    %92 = vmatprep.subr.mxu0 0.0
    %93 = vmatpush1.msra.mxu0 0.0
    %94 = vmatprep.subr.mxu0 0.0
    %95 = vmatpush1.msra.mxu0 0.0
    %96 = vmatprep.subr.mxu0 0.0
    %97 = vmatpush1.msra.mxu0 0.0
    %98 = vmatprep.subr.mxu0 0.0
    %99 = vmatpush1.msra.mxu0 0.0
    %100 = vmatprep.subr.mxu0 0.0
    %101 = vmatpush1.msra.mxu0 0.0
    %102 = vmatprep.subr.mxu0 0.0
    %103 = vmatpush1.msra.mxu0 0.0
    %104 = vmatprep.subr.mxu0 0.0
    %105 = vmatpush1.msra.mxu0 0.0
    %106 = vmatprep.subr.mxu0 0.0
    %107 = vmatpush1.msra.mxu0 0.0
    %108 = vmatprep.subr.mxu0 0.0
    %109 = vmatpush1.msra.mxu0 0.0
    %110 = vmatprep.subr.mxu0 0.0
    %111 = vmatpush1.msra.mxu0 0.0
    %112 = vmatprep.subr.mxu0 0.0
    %113 = vmatpush1.msra.mxu0 0.0
    %114 = vmatprep.subr.mxu0 0.0
    %115 = vmatpush1.msra.mxu0 0.0
    %116 = vmatprep.subr.mxu0 0.0
    %117 = vmatpush1.msra.mxu0 0.0
    %118 = vmatprep.subr.mxu0 0.0
    %119 = vmatpush1.msra.mxu0 0.0
    %120 = vmatprep.subr.mxu0 0.0
    %121 = vmatpush1.msra.mxu0 0.0
    %122 = vmatprep.subr.mxu0 0.0
    %123 = vmatpush1.msra.mxu0 0.0
    %124 = vmatprep.mubr.f32.mxu0 0.0
    %125 = vmatmul.mubr.f32.gmra.mrb[0].mxu0 %v55
    %v126 = vpop.f32.mrb[0].mxu0
    %v127 = vadd.f32 %v46, %v126
    %v128 = vpop.f32.mrb[0].mxu0
    %129 = vdwg.mxu0
    %v130 = vrot.slane %v39, 3
    %vm134 = vcmask 1046528
    %v135 = vrot.slane %v40, 1
    %v136 = vrot.slane %v41, 1
    %v137 = vsel %vm134, %v135, %v136
    %v138 = vrot.slane %v42, 1
    %v139 = vsel %vm134, %v136, %v138
    %vm142 = vcmask 31744
    %v144 = vsel %vm142, %v22, 0
    %v147 = vsel %vm142, %v23, 0
    %vm149 = vcmask 1043456
    %v150 = vsel %vm149, %v130, 0
    %152 = vmatprep.subr.mxu0 0.0
    %153 = vmatpush1.msra.mxu0 %v150
    %154 = vmatprep.subr.mxu0 0.0
    %155 = vmatpush1.msra.mxu0 0.0
    %156 = vmatprep.subr.mxu0 0.0
    %157 = vmatpush1.msra.mxu0 0.0
    %158 = vmatprep.subr.mxu0 0.0
    %159 = vmatpush1.msra.mxu0 0.0
    %160 = vmatprep.subr.mxu0 0.0
    %161 = vmatpush1.msra.mxu0 0.0
    %162 = vmatprep.subr.mxu0 0.0
    %163 = vmatpush1.msra.mxu0 0.0
    %164 = vmatprep.subr.mxu0 0.0
    %165 = vmatpush1.msra.mxu0 0.0
    %166 = vmatprep.subr.mxu0 0.0
    %167 = vmatpush1.msra.mxu0 0.0
    %168 = vmatprep.subr.mxu0 0.0
    %169 = vmatpush1.msra.mxu0 0.0
    %170 = vmatprep.subr.mxu0 0.0
    %171 = vmatpush1.msra.mxu0 0.0
    %172 = vmatprep.subr.mxu0 0.0
    %173 = vmatpush1.msra.mxu0 0.0
    %174 = vmatprep.subr.mxu0 0.0
    %175 = vmatpush1.msra.mxu0 0.0
    %176 = vmatprep.subr.mxu0 0.0
    %177 = vmatpush1.msra.mxu0 0.0
    %178 = vmatprep.subr.mxu0 0.0
    %179 = vmatpush1.msra.mxu0 0.0
    %180 = vmatprep.subr.mxu0 0.0
    %181 = vmatpush1.msra.mxu0 0.0
    %182 = vmatprep.subr.mxu0 0.0
    %183 = vmatpush1.msra.mxu0 0.0
    %184 = vmatprep.subr.mxu0 0.0
    %185 = vmatpush1.msra.mxu0 0.0
    %186 = vmatprep.subr.mxu0 0.0
    %187 = vmatpush1.msra.mxu0 0.0
    %188 = vmatprep.subr.mxu0 0.0
    %189 = vmatpush1.msra.mxu0 0.0
    %190 = vmatprep.subr.mxu0 0.0
    %191 = vmatpush1.msra.mxu0 0.0
    %192 = vmatprep.subr.mxu0 0.0
    %193 = vmatpush1.msra.mxu0 0.0
    %194 = vmatprep.subr.mxu0 0.0
    %195 = vmatpush1.msra.mxu0 0.0
    %196 = vmatprep.subr.mxu0 0.0
    %197 = vmatpush1.msra.mxu0 0.0
    %198 = vmatprep.subr.mxu0 0.0
    %199 = vmatpush1.msra.mxu0 0.0
    %200 = vmatprep.subr.mxu0 0.0
    %201 = vmatpush1.msra.mxu0 0.0
    %202 = vmatprep.subr.mxu0 0.0
    %203 = vmatpush1.msra.mxu0 0.0
    %204 = vmatprep.subr.mxu0 0.0
    %205 = vmatpush1.msra.mxu0 0.0
    %206 = vmatprep.subr.mxu0 0.0
    %207 = vmatpush1.msra.mxu0 0.0
    %208 = vmatprep.subr.mxu0 0.0
    %209 = vmatpush1.msra.mxu0 0.0
    %210 = vmatprep.subr.mxu0 0.0
    %211 = vmatpush1.msra.mxu0 0.0
    %212 = vmatprep.subr.mxu0 0.0
    %213 = vmatpush1.msra.mxu0 0.0
    %214 = vmatprep.subr.mxu0 0.0
    %215 = vmatpush1.msra.mxu0 0.0
    %216 = vmatprep.mubr.f32.mxu0 0.0
    %217 = vmatmul.mubr.f32.gmra.mrb[0].mxu0 %v144
    %v218 = vpop.f32.mrb[0].mxu0
    %v219 = vadd.f32 %v137, %v218
    %v220 = vpop.f32.mrb[0].mxu0
    %221 = vmatprep.mubr.f32.mxu0 0.0
    %222 = vmatmul.mubr.f32.gmra.mrb[0].mxu0 %v147
    %v223 = vpop.f32.mrb[0].mxu0
    %v224 = vadd.f32 %v139, %v223
    %v225 = vpop.f32.mrb[0].mxu0
    %226 = vdwg.mxu0
    %v227 = vlaneseq
    %v228 = vshrl.u32 %v227, 7
    %v229 = vsub.s32 1, %v228
    %v230 = vrot.slane %v37, %v229
    %vm231 = vcmask 1040384
    %v232 = vrot.slane %v39, 7
    %v233 = vrot.slane %v40, 7
    %v234 = vsel %vm231, %v232, %v233
    %vm235 = vcmask 15360
    %v237 = vsel %vm235, %v24, 0
    %v239 = vsel %vm49, %v234, 0
    %241 = vmatprep.subr.mxu0 0.0
    %242 = vmatpush1.msra.mxu0 %v239
    %243 = vmatprep.subr.mxu0 0.0
    %244 = vmatpush1.msra.mxu0 0.0
    %245 = vmatprep.subr.mxu0 0.0
    %246 = vmatpush1.msra.mxu0 0.0
    %247 = vmatprep.subr.mxu0 0.0
    %248 = vmatpush1.msra.mxu0 0.0
    %249 = vmatprep.subr.mxu0 0.0
    %250 = vmatpush1.msra.mxu0 0.0
    %251 = vmatprep.subr.mxu0 0.0
    %252 = vmatpush1.msra.mxu0 0.0
    %253 = vmatprep.subr.mxu0 0.0
    %254 = vmatpush1.msra.mxu0 0.0
    %255 = vmatprep.subr.mxu0 0.0
    %256 = vmatpush1.msra.mxu0 0.0
    %257 = vmatprep.subr.mxu0 0.0
    %258 = vmatpush1.msra.mxu0 0.0
    %259 = vmatprep.subr.mxu0 0.0
    %260 = vmatpush1.msra.mxu0 0.0
    %261 = vmatprep.subr.mxu0 0.0
    %262 = vmatpush1.msra.mxu0 0.0
    %263 = vmatprep.subr.mxu0 0.0
    %264 = vmatpush1.msra.mxu0 0.0
    %265 = vmatprep.subr.mxu0 0.0
    %266 = vmatpush1.msra.mxu0 0.0
    %267 = vmatprep.subr.mxu0 0.0
    %268 = vmatpush1.msra.mxu0 0.0
    %269 = vmatprep.subr.mxu0 0.0
    %270 = vmatpush1.msra.mxu0 0.0
    %271 = vmatprep.subr.mxu0 0.0
    %272 = vmatpush1.msra.mxu0 0.0
    %273 = vmatprep.subr.mxu0 0.0
    %274 = vmatpush1.msra.mxu0 0.0
    %275 = vmatprep.subr.mxu0 0.0
    %276 = vmatpush1.msra.mxu0 0.0
    %277 = vmatprep.subr.mxu0 0.0
    %278 = vmatpush1.msra.mxu0 0.0
    %279 = vmatprep.subr.mxu0 0.0
    %280 = vmatpush1.msra.mxu0 0.0
    %281 = vmatprep.subr.mxu0 0.0
    %282 = vmatpush1.msra.mxu0 0.0
    %283 = vmatprep.subr.mxu0 0.0
    %284 = vmatpush1.msra.mxu0 0.0
    %285 = vmatprep.subr.mxu0 0.0
    %286 = vmatpush1.msra.mxu0 0.0
    %287 = vmatprep.subr.mxu0 0.0
    %288 = vmatpush1.msra.mxu0 0.0
    %289 = vmatprep.subr.mxu0 0.0
    %290 = vmatpush1.msra.mxu0 0.0
    %291 = vmatprep.subr.mxu0 0.0
    %292 = vmatpush1.msra.mxu0 0.0
    %293 = vmatprep.subr.mxu0 0.0
    %294 = vmatpush1.msra.mxu0 0.0
    %295 = vmatprep.subr.mxu0 0.0
    %296 = vmatpush1.msra.mxu0 0.0
    %297 = vmatprep.subr.mxu0 0.0
    %298 = vmatpush1.msra.mxu0 0.0
    %299 = vmatprep.subr.mxu0 0.0
    %300 = vmatpush1.msra.mxu0 0.0
    %301 = vmatprep.subr.mxu0 0.0
    %302 = vmatpush1.msra.mxu0 0.0
    %303 = vmatprep.subr.mxu0 0.0
    %304 = vmatpush1.msra.mxu0 0.0
    %305 = vmatprep.mubr.f32.mxu0 0.0
    %306 = vmatmul.mubr.f32.gmra.mrb[0].mxu0 %v237
    %v307 = vpop.f32.mrb[0].mxu0
    %v308 = vadd.f32 %v230, %v307
    %v309 = vpop.f32.mrb[0].mxu0
    %310 = vdwg.mxu0
    %vm311 = vcmask 261120
    %v313 = vsel %vm311, %v219, 0
    %v316 = vsel %vm311, %v224, 0
    %318 = vmatprep.subr.mxu0 0.0
    %319 = vmatpush1.msra.mxu0 %v25
    %320 = vmatprep.subr.mxu0 0.0
    %321 = vmatpush1.msra.mxu0 %v28
    %322 = vmatprep.subr.mxu0 0.0
    %323 = vmatpush1.msra.mxu0 %v31
    %324 = vmatprep.subr.mxu0 0.0
    %325 = vmatpush1.msra.mxu0 %v34
    %326 = vmatprep.subr.mxu0 0.0
    %327 = vmatpush1.msra.mxu0 0.0
    %328 = vmatprep.subr.mxu0 0.0
    %329 = vmatpush1.msra.mxu0 0.0
    %330 = vmatprep.subr.mxu0 0.0
    %331 = vmatpush1.msra.mxu0 0.0
    %332 = vmatprep.subr.mxu0 0.0
    %333 = vmatpush1.msra.mxu0 0.0
    %334 = vmatprep.subr.mxu0 0.0
    %335 = vmatpush1.msra.mxu0 0.0
    %336 = vmatprep.subr.mxu0 0.0
    %337 = vmatpush1.msra.mxu0 0.0
    %338 = vmatprep.subr.mxu0 0.0
    %339 = vmatpush1.msra.mxu0 0.0
    %340 = vmatprep.subr.mxu0 0.0
    %341 = vmatpush1.msra.mxu0 0.0
    %342 = vmatprep.subr.mxu0 0.0
    %343 = vmatpush1.msra.mxu0 0.0
    %344 = vmatprep.subr.mxu0 0.0
    %345 = vmatpush1.msra.mxu0 0.0
    %346 = vmatprep.subr.mxu0 0.0
    %347 = vmatpush1.msra.mxu0 0.0
    %348 = vmatprep.subr.mxu0 0.0
    %349 = vmatpush1.msra.mxu0 0.0
    %350 = vmatprep.subr.mxu0 0.0
    %351 = vmatpush1.msra.mxu0 0.0
    %352 = vmatprep.subr.mxu0 0.0
    %353 = vmatpush1.msra.mxu0 0.0
    %354 = vmatprep.subr.mxu0 0.0
    %355 = vmatpush1.msra.mxu0 0.0
    %356 = vmatprep.subr.mxu0 0.0
    %357 = vmatpush1.msra.mxu0 0.0
    %358 = vmatprep.subr.mxu0 0.0
    %359 = vmatpush1.msra.mxu0 0.0
    %360 = vmatprep.subr.mxu0 0.0
    %361 = vmatpush1.msra.mxu0 0.0
    %362 = vmatprep.subr.mxu0 0.0
    %363 = vmatpush1.msra.mxu0 0.0
    %364 = vmatprep.subr.mxu0 0.0
    %365 = vmatpush1.msra.mxu0 0.0
    %366 = vmatprep.subr.mxu0 0.0
    %367 = vmatpush1.msra.mxu0 0.0
    %368 = vmatprep.subr.mxu0 0.0
    %369 = vmatpush1.msra.mxu0 0.0
    %370 = vmatprep.subr.mxu0 0.0
    %371 = vmatpush1.msra.mxu0 0.0
    %372 = vmatprep.subr.mxu0 0.0
    %373 = vmatpush1.msra.mxu0 0.0
    %374 = vmatprep.subr.mxu0 0.0
    %375 = vmatpush1.msra.mxu0 0.0
    %376 = vmatprep.subr.mxu0 0.0
    %377 = vmatpush1.msra.mxu0 0.0
    %378 = vmatprep.subr.mxu0 0.0
    %379 = vmatpush1.msra.mxu0 0.0
    %380 = vmatprep.subr.mxu0 0.0
    %381 = vmatpush1.msra.mxu0 0.0
    %382 = vmatprep.mubr.f32.mxu0 0.0
    %383 = vmatmul.mubr.f32.gmra.mrb[0].mxu0 %v313
    %v384 = vpop.f32.mrb[0].mxu0
    %v385 = vadd.f32 0.0, %v384
    %v386 = vpop.f32.mrb[0].mxu0
    %387 = vmatprep.mubr.f32.mxu0 0.0
    %388 = vmatmul.mubr.f32.gmra.mrb[0].mxu0 %v316
    %v389 = vpop.f32.mrb[0].mxu0
    %v390 = vadd.f32 0.0, %v389
    %v391 = vpop.f32.mrb[0].mxu0
    %392 = vdwg.mxu0
    %v393 = vlaneseq
    %v394 = vshrl.u32 %v393, 7
    %v395 = vsub.s32 2, %v394
    %v396 = vrot.slane %v37, %v395
    %v397 = vadd.f32 %v385, %v396
    %v398 = vadd.f32 %v390, %v396
    %401 = vrot.lane.b32.xlu0 %v397, 120
    %v402 = vpop.permute.xlu0 %401
    %403 = vrot.lane.b32.xlu0 %v398, 120
    %v404 = vpop.permute.xlu0 %403
    %407 = vrot.lane.b32.xlu0 %v397, 112
    %v408 = vpop.permute.xlu0 %407
    %409 = vrot.lane.b32.xlu0 %v398, 112
    %v410 = vpop.permute.xlu0 %409
    %413 = vrot.lane.b32.xlu0 %v397, 104
    %v414 = vpop.permute.xlu0 %413
    %415 = vrot.lane.b32.xlu0 %v398, 104
    %v416 = vpop.permute.xlu0 %415
    %v419 = vlaneseq
    %v420 = vshrl.u32 %v419, 7
    %v421 = vsub.s32 3, %v420
    %v422 = vrot.slane %v37, %v421
    %424 = vrot.lane.b32.xlu0 %v422, 32
    %v425 = vpop.permute.xlu0 %424
    %v427 = vadd.f32 %v385, %v425
    %v428 = vadd.f32 %v390, %v425
    %431 = vrot.lane.b32.xlu0 %v427, 120
    %v432 = vpop.permute.xlu0 %431
    %433 = vrot.lane.b32.xlu0 %v428, 120
    %v434 = vpop.permute.xlu0 %433
    %435 = vrot.lane.b32.xlu0 %v427, 112
    %v436 = vpop.permute.xlu0 %435
    %437 = vrot.lane.b32.xlu0 %v428, 112
    %v438 = vpop.permute.xlu0 %437
    %439 = vrot.lane.b32.xlu0 %v427, 104
    %v440 = vpop.permute.xlu0 %439
    %441 = vrot.lane.b32.xlu0 %v428, 104
    %v442 = vpop.permute.xlu0 %441
    %v443 = vlaneseq
    %v444 = vshrl.u32 %v443, 7
    %v445 = vsub.s32 4, %v444
    %v446 = vrot.slane %v37, %v445
    %448 = vrot.lane.b32.xlu0 %v446, 64
    %v449 = vpop.permute.xlu0 %448
    %v451 = vadd.f32 %v385, %v449
    %v452 = vadd.f32 %v390, %v449
    %455 = vrot.lane.b32.xlu0 %v451, 120
    %v456 = vpop.permute.xlu0 %455
    %457 = vrot.lane.b32.xlu0 %v452, 120
    %v458 = vpop.permute.xlu0 %457
    %459 = vrot.lane.b32.xlu0 %v451, 112
    %v460 = vpop.permute.xlu0 %459
    %461 = vrot.lane.b32.xlu0 %v452, 112
    %v462 = vpop.permute.xlu0 %461
    %463 = vrot.lane.b32.xlu0 %v451, 104
    %v464 = vpop.permute.xlu0 %463
    %465 = vrot.lane.b32.xlu0 %v452, 104
    %v466 = vpop.permute.xlu0 %465
    %v467 = vmul.f32 %v397, 0.35355338
    %v468 = vmul.f32 %v398, 0.35355338
    %v469 = vmul.f32 %v402, 0.35355338
    %v470 = vmul.f32 %v404, 0.35355338
    %v471 = vmul.f32 %v408, 0.35355338
    %v472 = vmul.f32 %v410, 0.35355338
    %v473 = vmul.f32 %v414, 0.35355338
    %v474 = vmul.f32 %v416, 0.35355338
    %475 = vrot.lane.b32.xlu0 %v427, 96
    %v476 = vpop.permute.xlu0 %475
    %477 = vrot.lane.b32.xlu0 %v428, 96
    %v478 = vpop.permute.xlu0 %477
    %479 = vrot.lane.b32.xlu0 %v432, 96
    %v480 = vpop.permute.xlu0 %479
    %481 = vrot.lane.b32.xlu0 %v434, 96
    %v482 = vpop.permute.xlu0 %481
    %483 = vrot.lane.b32.xlu0 %v436, 96
    %v484 = vpop.permute.xlu0 %483
    %485 = vrot.lane.b32.xlu0 %v438, 96
    %v486 = vpop.permute.xlu0 %485
    %487 = vrot.lane.b32.xlu0 %v440, 96
    %v488 = vpop.permute.xlu0 %487
    %489 = vrot.lane.b32.xlu0 %v442, 96
    %v490 = vpop.permute.xlu0 %489
    %vm491 = vcmask 64512
    %v493 = vsel %vm491, %v467, 0
    %v496 = vsel %vm491, %v468, 0
    %v499 = vsel %vm491, %v469, 0
    %v502 = vsel %vm491, %v470, 0
    %v505 = vsel %vm491, %v471, 0
    %v508 = vsel %vm491, %v472, 0
    %v511 = vsel %vm491, %v473, 0
    %v514 = vsel %vm491, %v474, 0
    %v516 = vsel %vm491, %v476, 0
    %v518 = vsel %vm491, %v478, 0
    %v520 = vsel %vm491, %v480, 0
    %v522 = vsel %vm491, %v482, 0
    %v524 = vsel %vm491, %v484, 0
    %v526 = vsel %vm491, %v486, 0
    %v528 = vsel %vm491, %v488, 0
    %v530 = vsel %vm491, %v490, 0
    %532 = vmatprep.subr.mxu0 0.0
    %533 = vmatpush1.xpose.msra.mxu0 %v516
    %534 = vmatprep.subr.mxu0 0.0
    %535 = vmatpush1.xpose.msra.mxu0 %v518
    %536 = vmatprep.subr.mxu0 0.0
    %537 = vmatpush1.xpose.msra.mxu0 %v520
    %538 = vmatprep.subr.mxu0 0.0
    %539 = vmatpush1.xpose.msra.mxu0 %v522
    %540 = vmatprep.subr.mxu0 0.0
    %541 = vmatpush1.xpose.msra.mxu0 %v524
    %542 = vmatprep.subr.mxu0 0.0
    %543 = vmatpush1.xpose.msra.mxu0 %v526
    %544 = vmatprep.subr.mxu0 0.0
    %545 = vmatpush1.xpose.msra.mxu0 %v528
    %546 = vmatprep.subr.mxu0 0.0
    %547 = vmatpush1.xpose.msra.mxu0 %v530
    %548 = vmatprep.subr.mxu0 0.0
    %549 = vmatpush1.xpose.msra.mxu0 0.0
    %550 = vmatprep.subr.mxu0 0.0
    %551 = vmatpush1.xpose.msra.mxu0 0.0
    %552 = vmatprep.subr.mxu0 0.0
    %553 = vmatpush1.xpose.msra.mxu0 0.0
    %554 = vmatprep.subr.mxu0 0.0
    %555 = vmatpush1.xpose.msra.mxu0 0.0
    %556 = vmatprep.subr.mxu0 0.0
    %557 = vmatpush1.xpose.msra.mxu0 0.0
    %558 = vmatprep.subr.mxu0 0.0
    %559 = vmatpush1.xpose.msra.mxu0 0.0
    %560 = vmatprep.subr.mxu0 0.0
    %561 = vmatpush1.xpose.msra.mxu0 0.0
    %562 = vmatprep.subr.mxu0 0.0
    %563 = vmatpush1.xpose.msra.mxu0 0.0
    %564 = vmatprep.subr.mxu0 0.0
    %565 = vmatpush1.xpose.msra.mxu0 0.0
    %566 = vmatprep.subr.mxu0 0.0
    %567 = vmatpush1.xpose.msra.mxu0 0.0
    %568 = vmatprep.subr.mxu0 0.0
    %569 = vmatpush1.xpose.msra.mxu0 0.0
    %570 = vmatprep.subr.mxu0 0.0
    %571 = vmatpush1.xpose.msra.mxu0 0.0
    %572 = vmatprep.subr.mxu0 0.0
    %573 = vmatpush1.xpose.msra.mxu0 0.0
    %574 = vmatprep.subr.mxu0 0.0
    %575 = vmatpush1.xpose.msra.mxu0 0.0
    %576 = vmatprep.subr.mxu0 0.0
    %577 = vmatpush1.xpose.msra.mxu0 0.0
    %578 = vmatprep.subr.mxu0 0.0
    %579 = vmatpush1.xpose.msra.mxu0 0.0
    %580 = vmatprep.subr.mxu0 0.0
    %581 = vmatpush1.xpose.msra.mxu0 0.0
    %582 = vmatprep.subr.mxu0 0.0
    %583 = vmatpush1.xpose.msra.mxu0 0.0
    %584 = vmatprep.subr.mxu0 0.0
    %585 = vmatpush1.xpose.msra.mxu0 0.0
    %586 = vmatprep.subr.mxu0 0.0
    %587 = vmatpush1.xpose.msra.mxu0 0.0
    %588 = vmatprep.subr.mxu0 0.0
    %589 = vmatpush1.xpose.msra.mxu0 0.0
    %590 = vmatprep.subr.mxu0 0.0
    %591 = vmatpush1.xpose.msra.mxu0 0.0
    %592 = vmatprep.subr.mxu0 0.0
    %593 = vmatpush1.xpose.msra.mxu0 0.0
    %594 = vmatprep.subr.mxu0 0.0
    %595 = vmatpush1.xpose.msra.mxu0 0.0
    %596 = vmatprep.mubr.f32.mxu0 0.0
    %597 = vmatmul.mubr.f32.gmra.mrb[0].mxu0 %v493
    %v598 = vpop.f32.mrb[0].mxu0
    %v599 = vadd.f32 0.0, %v598
    %v600 = vpop.f32.mrb[0].mxu0
    %601 = vmatprep.mubr.f32.mxu0 0.0
    %602 = vmatmul.mubr.f32.gmra.mrb[0].mxu0 %v496
    %v603 = vpop.f32.mrb[0].mxu0
    %v604 = vadd.f32 0.0, %v603
    %v605 = vpop.f32.mrb[0].mxu0
    %606 = vmatprep.mubr.f32.mxu0 0.0
    %607 = vmatmul.mubr.f32.gmra.mrb[0].mxu0 %v499
    %v608 = vpop.f32.mrb[0].mxu0
    %v609 = vadd.f32 0.0, %v608
    %v610 = vpop.f32.mrb[0].mxu0
    %611 = vmatprep.mubr.f32.mxu0 0.0
    %612 = vmatmul.mubr.f32.gmra.mrb[0].mxu0 %v502
    %v613 = vpop.f32.mrb[0].mxu0
    %v614 = vadd.f32 0.0, %v613
    %v615 = vpop.f32.mrb[0].mxu0
    %616 = vmatprep.mubr.f32.mxu0 0.0
    %617 = vmatmul.mubr.f32.gmra.mrb[0].mxu0 %v505
    %v618 = vpop.f32.mrb[0].mxu0
    %v619 = vadd.f32 0.0, %v618
    %v620 = vpop.f32.mrb[0].mxu0
    %621 = vmatprep.mubr.f32.mxu0 0.0
    %622 = vmatmul.mubr.f32.gmra.mrb[0].mxu0 %v508
    %v623 = vpop.f32.mrb[0].mxu0
    %v624 = vadd.f32 0.0, %v623
    %v625 = vpop.f32.mrb[0].mxu0
    %626 = vmatprep.mubr.f32.mxu0 0.0
    %627 = vmatmul.mubr.f32.gmra.mrb[0].mxu0 %v511
    %v628 = vpop.f32.mrb[0].mxu0
    %v629 = vadd.f32 0.0, %v628
    %v630 = vpop.f32.mrb[0].mxu0
    %631 = vmatprep.mubr.f32.mxu0 0.0
    %632 = vmatmul.mubr.f32.gmra.mrb[0].mxu0 %v514
    %v633 = vpop.f32.mrb[0].mxu0
    %v634 = vadd.f32 0.0, %v633
    %v635 = vpop.f32.mrb[0].mxu0
    %636 = vdwg.mxu0
    %v637 = vlaneseq
    %v638 = vshrl.u32 %v637, 7
    %v639 = vadd.s32 %v638, 8
    %v640 = vadd.s32 %v638, 16
    %v641 = vadd.s32 %v638, 24
    %v642 = vadd.s32 %v638, 32
    %v643 = vadd.s32 %v638, 40
    %v644 = vadd.s32 %v638, 48
    %v645 = vadd.s32 %v638, 56
    %v646 = vlaneseq
    %v647 = vand.u32 %v646, 127
    %v648 = vshra.s32 %v638, 3
    %v649 = vshra.s32 %v639, 3
    %v650 = vshra.s32 %v640, 3
    %v651 = vshra.s32 %v641, 3
    %v652 = vshra.s32 %v642, 3
    %v653 = vshra.s32 %v643, 3
    %v654 = vshra.s32 %v644, 3
    %v655 = vshra.s32 %v645, 3
    %v656 = vshra.s32 %v647, 3
    %vm657 = vcmp.eq.s32.totalorder %v648, %v656
    %vm658 = vcmp.eq.s32.totalorder %v649, %v656
    %vm659 = vcmp.eq.s32.totalorder %v650, %v656
    %vm660 = vcmp.eq.s32.totalorder %v651, %v656
    %vm661 = vcmp.eq.s32.totalorder %v652, %v656
    %vm662 = vcmp.eq.s32.totalorder %v653, %v656
    %vm663 = vcmp.eq.s32.totalorder %v654, %v656
    %vm664 = vcmp.eq.s32.totalorder %v655, %v656
    %v665 = vsel %vm657, %v599, -1e+30
    %v666 = vsel %vm658, %v604, -1e+30
    %v667 = vsel %vm659, %v609, -1e+30
    %v668 = vsel %vm660, %v614, -1e+30
    %v669 = vsel %vm661, %v619, -1e+30
    %v670 = vsel %vm662, %v624, -1e+30
    %v671 = vsel %vm663, %v629, -1e+30
    %v672 = vsel %vm664, %v634, -1e+30
    %vm673 = vcmask 523264
    %v674 = vsel %vm673, %v665, -inf
    %675 = vmax.xlane.f32.xlu0 %v674
    %v676 = vpop.xlane.xlu0 %675
    %v677 = vsel %vm673, %v666, -inf
    %678 = vmax.xlane.f32.xlu0 %v677
    %v679 = vpop.xlane.xlu0 %678
    %v680 = vsel %vm673, %v667, -inf
    %681 = vmax.xlane.f32.xlu0 %v680
    %v682 = vpop.xlane.xlu0 %681
    %v683 = vsel %vm673, %v668, -inf
    %684 = vmax.xlane.f32.xlu0 %v683
    %v685 = vpop.xlane.xlu0 %684
    %v686 = vsel %vm673, %v669, -inf
    %687 = vmax.xlane.f32.xlu0 %v686
    %v688 = vpop.xlane.xlu0 %687
    %v689 = vsel %vm673, %v670, -inf
    %690 = vmax.xlane.f32.xlu0 %v689
    %v691 = vpop.xlane.xlu0 %690
    %v692 = vsel %vm673, %v671, -inf
    %693 = vmax.xlane.f32.xlu0 %v692
    %v694 = vpop.xlane.xlu0 %693
    %v695 = vsel %vm673, %v672, -inf
    %696 = vmax.xlane.f32.xlu0 %v695
    %v697 = vpop.xlane.xlu0 %696
    %v698 = vsub.f32 %v665, %v676
    %v699 = vsub.f32 %v666, %v679
    %v700 = vsub.f32 %v667, %v682
    %v701 = vsub.f32 %v668, %v685
    %v702 = vsub.f32 %v669, %v688
    %v703 = vsub.f32 %v670, %v691
    %v704 = vsub.f32 %v671, %v694
    %v705 = vsub.f32 %v672, %v697
    %v706 = vmul.f32 %v698, 1.442695
    %v707 = vpow.pop %v706
    %v708 = vmul.f32 %v699, 1.442695
    %v709 = vpow.pop %v708
    %v710 = vmul.f32 %v700, 1.442695
    %v711 = vpow.pop %v710
    %v712 = vmul.f32 %v701, 1.442695
    %v713 = vpow.pop %v712
    %v714 = vmul.f32 %v702, 1.442695
    %v715 = vpow.pop %v714
    %v716 = vmul.f32 %v703, 1.442695
    %v717 = vpow.pop %v716
    %v718 = vmul.f32 %v704, 1.442695
    %v719 = vpow.pop %v718
    %v720 = vmul.f32 %v705, 1.442695
    %v721 = vpow.pop %v720
    %v722 = vsel %vm673, %v707, 0.0
    %723 = vadd.xlane.f32.xlu0 %v722
    %v724 = vpop.xlane.xlu0 %723
    %v725 = vsel %vm673, %v709, 0.0
    %726 = vadd.xlane.f32.xlu0 %v725
    %v727 = vpop.xlane.xlu0 %726
    %v728 = vsel %vm673, %v711, 0.0
    %729 = vadd.xlane.f32.xlu0 %v728
    %v730 = vpop.xlane.xlu0 %729
    %v731 = vsel %vm673, %v713, 0.0
    %732 = vadd.xlane.f32.xlu0 %v731
    %v733 = vpop.xlane.xlu0 %732
    %v734 = vsel %vm673, %v715, 0.0
    %735 = vadd.xlane.f32.xlu0 %v734
    %v736 = vpop.xlane.xlu0 %735
    %v737 = vsel %vm673, %v717, 0.0
    %738 = vadd.xlane.f32.xlu0 %v737
    %v739 = vpop.xlane.xlu0 %738
    %v740 = vsel %vm673, %v719, 0.0
    %741 = vadd.xlane.f32.xlu0 %v740
    %v742 = vpop.xlane.xlu0 %741
    %v743 = vsel %vm673, %v721, 0.0
    %744 = vadd.xlane.f32.xlu0 %v743
    %v745 = vpop.xlane.xlu0 %744
    %v746 = vrcp.pop %v724
    %v747 = vrcp.pop %v727
    %v748 = vrcp.pop %v730
    %v749 = vrcp.pop %v733
    %v750 = vrcp.pop %v736
    %v751 = vrcp.pop %v739
    %v752 = vrcp.pop %v742
    %v753 = vrcp.pop %v745
    %v754 = vmul.f32 %v707, %v746
    %v755 = vmul.f32 %v709, %v747
    %v756 = vmul.f32 %v711, %v748
    %v757 = vmul.f32 %v713, %v749
    %v758 = vmul.f32 %v715, %v750
    %v759 = vmul.f32 %v717, %v751
    %v760 = vmul.f32 %v719, %v752
    %v761 = vmul.f32 %v721, %v753
    %762 = vrot.lane.b32.xlu0 %v451, 64
    %v763 = vpop.permute.xlu0 %762
    %764 = vrot.lane.b32.xlu0 %v452, 64
    %v765 = vpop.permute.xlu0 %764
    %766 = vrot.lane.b32.xlu0 %v456, 64
    %v767 = vpop.permute.xlu0 %766
    %768 = vrot.lane.b32.xlu0 %v458, 64
    %v769 = vpop.permute.xlu0 %768
    %770 = vrot.lane.b32.xlu0 %v460, 64
    %v771 = vpop.permute.xlu0 %770
    %772 = vrot.lane.b32.xlu0 %v462, 64
    %v773 = vpop.permute.xlu0 %772
    %774 = vrot.lane.b32.xlu0 %v464, 64
    %v775 = vpop.permute.xlu0 %774
    %776 = vrot.lane.b32.xlu0 %v466, 64
    %v777 = vpop.permute.xlu0 %776
    %v787 = vsel %vm673, %v754, 0
    %v790 = vsel %vm673, %v755, 0
    %v793 = vsel %vm673, %v756, 0
    %v796 = vsel %vm673, %v757, 0
    %v799 = vsel %vm673, %v758, 0
    %v802 = vsel %vm673, %v759, 0
    %v805 = vsel %vm673, %v760, 0
    %v808 = vsel %vm673, %v761, 0
    %810 = vmatprep.subr.mxu0 0.0
    %811 = vmatpush1.msra.mxu0 %v763
    %812 = vmatprep.subr.mxu0 0.0
    %813 = vmatpush1.msra.mxu0 %v765
    %814 = vmatprep.subr.mxu0 0.0
    %815 = vmatpush1.msra.mxu0 %v767
    %816 = vmatprep.subr.mxu0 0.0
    %817 = vmatpush1.msra.mxu0 %v769
    %818 = vmatprep.subr.mxu0 0.0
    %819 = vmatpush1.msra.mxu0 %v771
    %820 = vmatprep.subr.mxu0 0.0
    %821 = vmatpush1.msra.mxu0 %v773
    %822 = vmatprep.subr.mxu0 0.0
    %823 = vmatpush1.msra.mxu0 %v775
    %824 = vmatprep.subr.mxu0 0.0
    %825 = vmatpush1.msra.mxu0 %v777
    %826 = vmatprep.subr.mxu0 0.0
    %827 = vmatpush1.msra.mxu0 0.0
    %828 = vmatprep.subr.mxu0 0.0
    %829 = vmatpush1.msra.mxu0 0.0
    %830 = vmatprep.subr.mxu0 0.0
    %831 = vmatpush1.msra.mxu0 0.0
    %832 = vmatprep.subr.mxu0 0.0
    %833 = vmatpush1.msra.mxu0 0.0
    %834 = vmatprep.subr.mxu0 0.0
    %835 = vmatpush1.msra.mxu0 0.0
    %836 = vmatprep.subr.mxu0 0.0
    %837 = vmatpush1.msra.mxu0 0.0
    %838 = vmatprep.subr.mxu0 0.0
    %839 = vmatpush1.msra.mxu0 0.0
    %840 = vmatprep.subr.mxu0 0.0
    %841 = vmatpush1.msra.mxu0 0.0
    %842 = vmatprep.subr.mxu0 0.0
    %843 = vmatpush1.msra.mxu0 0.0
    %844 = vmatprep.subr.mxu0 0.0
    %845 = vmatpush1.msra.mxu0 0.0
    %846 = vmatprep.subr.mxu0 0.0
    %847 = vmatpush1.msra.mxu0 0.0
    %848 = vmatprep.subr.mxu0 0.0
    %849 = vmatpush1.msra.mxu0 0.0
    %850 = vmatprep.subr.mxu0 0.0
    %851 = vmatpush1.msra.mxu0 0.0
    %852 = vmatprep.subr.mxu0 0.0
    %853 = vmatpush1.msra.mxu0 0.0
    %854 = vmatprep.subr.mxu0 0.0
    %855 = vmatpush1.msra.mxu0 0.0
    %856 = vmatprep.subr.mxu0 0.0
    %857 = vmatpush1.msra.mxu0 0.0
    %858 = vmatprep.subr.mxu0 0.0
    %859 = vmatpush1.msra.mxu0 0.0
    %860 = vmatprep.subr.mxu0 0.0
    %861 = vmatpush1.msra.mxu0 0.0
    %862 = vmatprep.subr.mxu0 0.0
    %863 = vmatpush1.msra.mxu0 0.0
    %864 = vmatprep.subr.mxu0 0.0
    %865 = vmatpush1.msra.mxu0 0.0
    %866 = vmatprep.subr.mxu0 0.0
    %867 = vmatpush1.msra.mxu0 0.0
    %868 = vmatprep.subr.mxu0 0.0
    %869 = vmatpush1.msra.mxu0 0.0
    %870 = vmatprep.subr.mxu0 0.0
    %871 = vmatpush1.msra.mxu0 0.0
    %872 = vmatprep.subr.mxu0 0.0
    %873 = vmatpush1.msra.mxu0 0.0
    %874 = vmatprep.mubr.f32.mxu0 0.0
    %875 = vmatmul.mubr.f32.gmra.mrb[0].mxu0 %v787
    %v876 = vpop.f32.mrb[0].mxu0
    %v877 = vadd.f32 0.0, %v876
    %v878 = vpop.f32.mrb[0].mxu0
    %879 = vmatprep.mubr.f32.mxu0 0.0
    %880 = vmatmul.mubr.f32.gmra.mrb[0].mxu0 %v790
    %v881 = vpop.f32.mrb[0].mxu0
    %v882 = vadd.f32 0.0, %v881
    %v883 = vpop.f32.mrb[0].mxu0
    %884 = vmatprep.mubr.f32.mxu0 0.0
    %885 = vmatmul.mubr.f32.gmra.mrb[0].mxu0 %v793
    %v886 = vpop.f32.mrb[0].mxu0
    %v887 = vadd.f32 0.0, %v886
    %v888 = vpop.f32.mrb[0].mxu0
    %889 = vmatprep.mubr.f32.mxu0 0.0
    %890 = vmatmul.mubr.f32.gmra.mrb[0].mxu0 %v796
    %v891 = vpop.f32.mrb[0].mxu0
    %v892 = vadd.f32 0.0, %v891
    %v893 = vpop.f32.mrb[0].mxu0
    %894 = vmatprep.mubr.f32.mxu0 0.0
    %895 = vmatmul.mubr.f32.gmra.mrb[0].mxu0 %v799
    %v896 = vpop.f32.mrb[0].mxu0
    %v897 = vadd.f32 0.0, %v896
    %v898 = vpop.f32.mrb[0].mxu0
    %899 = vmatprep.mubr.f32.mxu0 0.0
    %900 = vmatmul.mubr.f32.gmra.mrb[0].mxu0 %v802
    %v901 = vpop.f32.mrb[0].mxu0
    %v902 = vadd.f32 0.0, %v901
    %v903 = vpop.f32.mrb[0].mxu0
    %904 = vmatprep.mubr.f32.mxu0 0.0
    %905 = vmatmul.mubr.f32.gmra.mrb[0].mxu0 %v805
    %v906 = vpop.f32.mrb[0].mxu0
    %v907 = vadd.f32 0.0, %v906
    %v908 = vpop.f32.mrb[0].mxu0
    %909 = vmatprep.mubr.f32.mxu0 0.0
    %910 = vmatmul.mubr.f32.gmra.mrb[0].mxu0 %v808
    %v911 = vpop.f32.mrb[0].mxu0
    %v912 = vadd.f32 0.0, %v911
    %v913 = vpop.f32.mrb[0].mxu0
    %914 = vdwg.mxu0
    %917 = vrot.lane.b32.xlu0 %v887, 8
    %v918 = vpop.permute.xlu0 %917
    %919 = vrot.lane.b32.xlu0 %v892, 8
    %v920 = vpop.permute.xlu0 %919
    %925 = vrot.lane.b32.xlu0 %v897, 16
    %v926 = vpop.permute.xlu0 %925
    %927 = vrot.lane.b32.xlu0 %v902, 16
    %v928 = vpop.permute.xlu0 %927
    %933 = vrot.lane.b32.xlu0 %v907, 24
    %v934 = vpop.permute.xlu0 %933
    %935 = vrot.lane.b32.xlu0 %v912, 24
    %v936 = vpop.permute.xlu0 %935
    %v939 = vsel %vm491, %v877, %v918
    %v940 = vsel %vm491, %v882, %v920
    %vm941 = vcmask 130048
    %v942 = vsel %vm941, %v939, %v926
    %v943 = vsel %vm941, %v940, %v928
    %vm944 = vcmask 195584
    %v945 = vsel %vm944, %v942, %v934
    %v946 = vsel %vm944, %v943, %v936
    %v947 = vlaneseq
    %v948 = vshrl.u32 %v947, 7
    %v949 = vsub.s32 5, %v948
    %v950 = vrot.slane %v37, %v949
    %955 = vrot.lane.b32.xlu0 %v25, 32
    %v956 = vpop.permute.xlu0 %955
    %957 = vrot.lane.b32.xlu0 %v28, 32
    %v958 = vpop.permute.xlu0 %957
    %959 = vrot.lane.b32.xlu0 %v31, 32
    %v960 = vpop.permute.xlu0 %959
    %961 = vrot.lane.b32.xlu0 %v34, 32
    %v962 = vpop.permute.xlu0 %961
    %v968 = vsel %vm311, %v945, 0
    %v971 = vsel %vm311, %v946, 0
    %973 = vmatprep.subr.mxu0 0.0
    %974 = vmatpush1.msra.mxu0 %v956
    %975 = vmatprep.subr.mxu0 0.0
    %976 = vmatpush1.msra.mxu0 %v958
    %977 = vmatprep.subr.mxu0 0.0
    %978 = vmatpush1.msra.mxu0 %v960
    %979 = vmatprep.subr.mxu0 0.0
    %980 = vmatpush1.msra.mxu0 %v962
    %981 = vmatprep.subr.mxu0 0.0
    %982 = vmatpush1.msra.mxu0 0.0
    %983 = vmatprep.subr.mxu0 0.0
    %984 = vmatpush1.msra.mxu0 0.0
    %985 = vmatprep.subr.mxu0 0.0
    %986 = vmatpush1.msra.mxu0 0.0
    %987 = vmatprep.subr.mxu0 0.0
    %988 = vmatpush1.msra.mxu0 0.0
    %989 = vmatprep.subr.mxu0 0.0
    %990 = vmatpush1.msra.mxu0 0.0
    %991 = vmatprep.subr.mxu0 0.0
    %992 = vmatpush1.msra.mxu0 0.0
    %993 = vmatprep.subr.mxu0 0.0
    %994 = vmatpush1.msra.mxu0 0.0
    %995 = vmatprep.subr.mxu0 0.0
    %996 = vmatpush1.msra.mxu0 0.0
    %997 = vmatprep.subr.mxu0 0.0
    %998 = vmatpush1.msra.mxu0 0.0
    %999 = vmatprep.subr.mxu0 0.0
    %1000 = vmatpush1.msra.mxu0 0.0
    %1001 = vmatprep.subr.mxu0 0.0
    %1002 = vmatpush1.msra.mxu0 0.0
    %1003 = vmatprep.subr.mxu0 0.0
    %1004 = vmatpush1.msra.mxu0 0.0
    %1005 = vmatprep.subr.mxu0 0.0
    %1006 = vmatpush1.msra.mxu0 0.0
    %1007 = vmatprep.subr.mxu0 0.0
    %1008 = vmatpush1.msra.mxu0 0.0
    %1009 = vmatprep.subr.mxu0 0.0
    %1010 = vmatpush1.msra.mxu0 0.0
    %1011 = vmatprep.subr.mxu0 0.0
    %1012 = vmatpush1.msra.mxu0 0.0
    %1013 = vmatprep.subr.mxu0 0.0
    %1014 = vmatpush1.msra.mxu0 0.0
    %1015 = vmatprep.subr.mxu0 0.0
    %1016 = vmatpush1.msra.mxu0 0.0
    %1017 = vmatprep.subr.mxu0 0.0
    %1018 = vmatpush1.msra.mxu0 0.0
    %1019 = vmatprep.subr.mxu0 0.0
    %1020 = vmatpush1.msra.mxu0 0.0
    %1021 = vmatprep.subr.mxu0 0.0
    %1022 = vmatpush1.msra.mxu0 0.0
    %1023 = vmatprep.subr.mxu0 0.0
    %1024 = vmatpush1.msra.mxu0 0.0
    %1025 = vmatprep.subr.mxu0 0.0
    %1026 = vmatpush1.msra.mxu0 0.0
    %1027 = vmatprep.subr.mxu0 0.0
    %1028 = vmatpush1.msra.mxu0 0.0
    %1029 = vmatprep.subr.mxu0 0.0
    %1030 = vmatpush1.msra.mxu0 0.0
    %1031 = vmatprep.subr.mxu0 0.0
    %1032 = vmatpush1.msra.mxu0 0.0
    %1033 = vmatprep.subr.mxu0 0.0
    %1034 = vmatpush1.msra.mxu0 0.0
    %1035 = vmatprep.subr.mxu0 0.0
    %1036 = vmatpush1.msra.mxu0 0.0
    %1037 = vmatprep.mubr.f32.mxu0 0.0
    %1038 = vmatmul.mubr.f32.gmra.mrb[0].mxu0 %v968
    %v1039 = vpop.f32.mrb[0].mxu0
    %v1040 = vadd.f32 %v950, %v1039
    %v1041 = vpop.f32.mrb[0].mxu0
    %1042 = vmatprep.mubr.f32.mxu0 0.0
    %1043 = vmatmul.mubr.f32.gmra.mrb[0].mxu0 %v971
    %v1044 = vpop.f32.mrb[0].mxu0
    %v1045 = vadd.f32 %v950, %v1044
    %v1046 = vpop.f32.mrb[0].mxu0
    %1047 = vdwg.mxu0
    %1048 = vrot.lane.b32.xlu0 %v756, 112
    %v1049 = vpop.permute.xlu0 %1048
    %1050 = vrot.lane.b32.xlu0 %v757, 112
    %v1051 = vpop.permute.xlu0 %1050
    %v1054 = vadd.f32 %v754, %v1049
    %v1055 = vadd.f32 %v755, %v1051
    %1056 = vrot.lane.b32.xlu0 %v758, 96
    %v1057 = vpop.permute.xlu0 %1056
    %1058 = vrot.lane.b32.xlu0 %v759, 96
    %v1059 = vpop.permute.xlu0 %1058
    %v1062 = vadd.f32 %v1054, %v1057
    %v1063 = vadd.f32 %v1055, %v1059
    %1064 = vrot.lane.b32.xlu0 %v760, 80
    %v1065 = vpop.permute.xlu0 %1064
    %1066 = vrot.lane.b32.xlu0 %v761, 80
    %v1067 = vpop.permute.xlu0 %1066
    %v1070 = vadd.f32 %v1062, %v1065
    %v1071 = vadd.f32 %v1063, %v1067
    %v1072 = vmul.f32 %v1070, 0.25
    %v1073 = vmul.f32 %v1071, 0.25
    %v1074 = vadd.f32 %v1040, %v219
    %v1075 = vadd.f32 %v1045, %v224
    %v1076 = vsel %vm311, %v1074, 0.0
    %1077 = vadd.xlane.f32.xlu0 %v1076
    %v1078 = vpop.xlane.xlu0 %1077
    %v1079 = vsel %vm311, %v1075, 0.0
    %1080 = vadd.xlane.f32.xlu0 %v1079
    %v1081 = vpop.xlane.xlu0 %1080
    %v1082 = vrcp.pop 32.0
    %v1083 = vmul.f32 %v1078, %v1082
    %v1084 = vmul.f32 %v1081, %v1082
    %v1085 = vsub.f32 %v1074, %v1083
    %v1086 = vsub.f32 %v1075, %v1084
    %v1087 = vmul.f32 %v1085, %v1085
    %v1088 = vmul.f32 %v1086, %v1086
    %v1089 = vsel %vm311, %v1087, 0.0
    %1090 = vadd.xlane.f32.xlu0 %v1089
    %v1091 = vpop.xlane.xlu0 %1090
    %v1092 = vsel %vm311, %v1088, 0.0
    %1093 = vadd.xlane.f32.xlu0 %v1092
    %v1094 = vpop.xlane.xlu0 %1093
    %v1095 = vmul.f32 %v1091, %v1082
    %v1096 = vmul.f32 %v1094, %v1082
    %v1097 = vadd.f32 %v1095, 1e-05
    %v1098 = vadd.f32 %v1096, 1e-05
    %v1099 = vrsqrt.pop %v1097
    %v1100 = vrsqrt.pop %v1098
    %v1101 = vmul.f32 %v1085, %v1099
    %v1102 = vmul.f32 %v1086, %v1100
    %v1103 = vlaneseq
    %v1104 = vshrl.u32 %v1103, 7
    %v1105 = vsub.s32 2, %v1104
    %v1106 = vrot.slane %v38, %v1105
    %v1107 = vmul.f32 %v1101, %v1106
    %v1108 = vmul.f32 %v1102, %v1106
    %v1109 = vlaneseq
    %v1110 = vshrl.u32 %v1109, 7
    %v1111 = vsub.s32 3, %v1110
    %v1112 = vrot.slane %v38, %v1111
    %v1113 = vadd.f32 %v1107, %v1112
    %v1114 = vadd.f32 %v1108, %v1112
    %v1115 = vsel %vm142, %v22, 0.0
    %1116 = vadd.xlane.f32.xlu0 %v1115
    %v1117 = vpop.xlane.xlu0 %1116
    %v1118 = vsel %vm142, %v23, 0.0
    %1119 = vadd.xlane.f32.xlu0 %v1118
    %v1120 = vpop.xlane.xlu0 %1119
    %vm1121 = vcmp.ne.f32.partialorder %v1117, 0.0
    %vm1122 = vcmp.ne.f32.partialorder %v1120, 0.0
    %v1123 = vsel %vm1121, 1, 0
    %v1124 = vsel %vm1122, 1, 0
    %v1125 = vcvt.s32.f32 %v1123
    %v1126 = vcvt.s32.f32 %v1124
    %v1127 = vmul.f32 %v1113, %v1125
    %v1128 = vmul.f32 %v1114, %v1126
    %v1129 = vsel %vm311, %v1127, 0.0
    %v1130 = vrot.slane %v1129, 4
    %v1131 = vadd.f32 %v1129, %v1130
    %v1132 = vrot.slane %v1131, 2
    %v1133 = vadd.f32 %v1131, %v1132
    %v1134 = vrot.slane %v1133, 1
    %v1135 = vadd.f32 %v1133, %v1134
    %v1136 = vrot.slane %v1125, 4
    %v1137 = vadd.f32 %v1125, %v1136
    %v1138 = vrot.slane %v1137, 2
    %v1139 = vadd.f32 %v1137, %v1138
    %v1140 = vrot.slane %v1139, 1
    %v1141 = vadd.f32 %v1139, %v1140
    %v1142 = vsel %vm311, %v1128, 0.0
    %v1143 = vrot.slane %v1142, 4
    %v1144 = vadd.f32 %v1142, %v1143
    %v1145 = vrot.slane %v1144, 2
    %v1146 = vadd.f32 %v1144, %v1145
    %v1147 = vrot.slane %v1146, 1
    %v1148 = vadd.f32 %v1146, %v1147
    %v1149 = vrot.slane %v1126, 4
    %v1150 = vadd.f32 %v1126, %v1149
    %v1151 = vrot.slane %v1150, 2
    %v1152 = vadd.f32 %v1150, %v1151
    %v1153 = vrot.slane %v1152, 1
    %v1154 = vadd.f32 %v1152, %v1153
    %v1155 = vsel %vm231, %v1135, %v1148
    %v1156 = vsel %vm231, %v1141, %v1154
    %v1157 = vmax.f32 %v1156, 1.0
    %v1158 = vrcp.pop %v1157
    %1160 = vset.pattern.permute.xlu0 0
    %1161 = vperm.xlu0 %1160, %v1158
    %v1162 = vpop.permute.xlu0 %1161
    %v1164 = vmul.f32 %v1155, %v1162
    %v1165 = vlaneseq
    %v1166 = vshrl.u32 %v1165, 7
    %v1167 = vsub.s32 6, %v1166
    %v1168 = vrot.slane %v37, %v1167
    %v1170 = vsel %vm311, %v127, 0
    %1172 = vmatprep.subr.mxu0 0.0
    %1173 = vmatpush1.msra.mxu0 %v26
    %1174 = vmatprep.subr.mxu0 0.0
    %1175 = vmatpush1.msra.mxu0 %v29
    %1176 = vmatprep.subr.mxu0 0.0
    %1177 = vmatpush1.msra.mxu0 %v32
    %1178 = vmatprep.subr.mxu0 0.0
    %1179 = vmatpush1.msra.mxu0 %v35
    %1180 = vmatprep.subr.mxu0 0.0
    %1181 = vmatpush1.msra.mxu0 0.0
    %1182 = vmatprep.subr.mxu0 0.0
    %1183 = vmatpush1.msra.mxu0 0.0
    %1184 = vmatprep.subr.mxu0 0.0
    %1185 = vmatpush1.msra.mxu0 0.0
    %1186 = vmatprep.subr.mxu0 0.0
    %1187 = vmatpush1.msra.mxu0 0.0
    %1188 = vmatprep.subr.mxu0 0.0
    %1189 = vmatpush1.msra.mxu0 0.0
    %1190 = vmatprep.subr.mxu0 0.0
    %1191 = vmatpush1.msra.mxu0 0.0
    %1192 = vmatprep.subr.mxu0 0.0
    %1193 = vmatpush1.msra.mxu0 0.0
    %1194 = vmatprep.subr.mxu0 0.0
    %1195 = vmatpush1.msra.mxu0 0.0
    %1196 = vmatprep.subr.mxu0 0.0
    %1197 = vmatpush1.msra.mxu0 0.0
    %1198 = vmatprep.subr.mxu0 0.0
    %1199 = vmatpush1.msra.mxu0 0.0
    %1200 = vmatprep.subr.mxu0 0.0
    %1201 = vmatpush1.msra.mxu0 0.0
    %1202 = vmatprep.subr.mxu0 0.0
    %1203 = vmatpush1.msra.mxu0 0.0
    %1204 = vmatprep.subr.mxu0 0.0
    %1205 = vmatpush1.msra.mxu0 0.0
    %1206 = vmatprep.subr.mxu0 0.0
    %1207 = vmatpush1.msra.mxu0 0.0
    %1208 = vmatprep.subr.mxu0 0.0
    %1209 = vmatpush1.msra.mxu0 0.0
    %1210 = vmatprep.subr.mxu0 0.0
    %1211 = vmatpush1.msra.mxu0 0.0
    %1212 = vmatprep.subr.mxu0 0.0
    %1213 = vmatpush1.msra.mxu0 0.0
    %1214 = vmatprep.subr.mxu0 0.0
    %1215 = vmatpush1.msra.mxu0 0.0
    %1216 = vmatprep.subr.mxu0 0.0
    %1217 = vmatpush1.msra.mxu0 0.0
    %1218 = vmatprep.subr.mxu0 0.0
    %1219 = vmatpush1.msra.mxu0 0.0
    %1220 = vmatprep.subr.mxu0 0.0
    %1221 = vmatpush1.msra.mxu0 0.0
    %1222 = vmatprep.subr.mxu0 0.0
    %1223 = vmatpush1.msra.mxu0 0.0
    %1224 = vmatprep.subr.mxu0 0.0
    %1225 = vmatpush1.msra.mxu0 0.0
    %1226 = vmatprep.subr.mxu0 0.0
    %1227 = vmatpush1.msra.mxu0 0.0
    %1228 = vmatprep.subr.mxu0 0.0
    %1229 = vmatpush1.msra.mxu0 0.0
    %1230 = vmatprep.subr.mxu0 0.0
    %1231 = vmatpush1.msra.mxu0 0.0
    %1232 = vmatprep.subr.mxu0 0.0
    %1233 = vmatpush1.msra.mxu0 0.0
    %1234 = vmatprep.subr.mxu0 0.0
    %1235 = vmatpush1.msra.mxu0 0.0
    %1236 = vmatprep.mubr.f32.mxu0 0.0
    %1237 = vmatmul.mubr.f32.gmra.mrb[0].mxu0 %v1170
    %v1238 = vpop.f32.mrb[0].mxu0
    %v1239 = vadd.f32 %v1168, %v1238
    %v1240 = vpop.f32.mrb[0].mxu0
    %1241 = vdwg.mxu0
    %v1243 = vrot.slane %v1239, 6
    %1244 = vrot.lane.b32.xlu0 %v1243, 120
    %v1245 = vpop.permute.xlu0 %1244
    %v1247 = vrot.slane %v1239, 4
    %1248 = vrot.lane.b32.xlu0 %v1247, 112
    %v1249 = vpop.permute.xlu0 %1248
    %v1251 = vrot.slane %v1239, 2
    %1252 = vrot.lane.b32.xlu0 %v1251, 104
    %v1253 = vpop.permute.xlu0 %1252
    %v1255 = vsel %vm49, %v1239, %v1245
    %v1256 = vsel %vm149, %v1255, %v1249
    %vm1257 = vcmask 1045504
    %v1258 = vsel %vm1257, %v1256, %v1253
    %1263 = vrot.lane.b32.xlu0 %v26, 96
    %v1264 = vpop.permute.xlu0 %1263
    %1265 = vrot.lane.b32.xlu0 %v29, 96
    %v1266 = vpop.permute.xlu0 %1265
    %1267 = vrot.lane.b32.xlu0 %v32, 96
    %v1268 = vpop.permute.xlu0 %1267
    %1269 = vrot.lane.b32.xlu0 %v35, 96
    %v1270 = vpop.permute.xlu0 %1269
    %v1276 = vsel %vm311, %v308, 0
    %1278 = vmatprep.subr.mxu0 0.0
    %1279 = vmatpush1.msra.mxu0 %v1264
    %1280 = vmatprep.subr.mxu0 0.0
    %1281 = vmatpush1.msra.mxu0 %v1266
    %1282 = vmatprep.subr.mxu0 0.0
    %1283 = vmatpush1.msra.mxu0 %v1268
    %1284 = vmatprep.subr.mxu0 0.0
    %1285 = vmatpush1.msra.mxu0 %v1270
    %1286 = vmatprep.subr.mxu0 0.0
    %1287 = vmatpush1.msra.mxu0 0.0
    %1288 = vmatprep.subr.mxu0 0.0
    %1289 = vmatpush1.msra.mxu0 0.0
    %1290 = vmatprep.subr.mxu0 0.0
    %1291 = vmatpush1.msra.mxu0 0.0
    %1292 = vmatprep.subr.mxu0 0.0
    %1293 = vmatpush1.msra.mxu0 0.0
    %1294 = vmatprep.subr.mxu0 0.0
    %1295 = vmatpush1.msra.mxu0 0.0
    %1296 = vmatprep.subr.mxu0 0.0
    %1297 = vmatpush1.msra.mxu0 0.0
    %1298 = vmatprep.subr.mxu0 0.0
    %1299 = vmatpush1.msra.mxu0 0.0
    %1300 = vmatprep.subr.mxu0 0.0
    %1301 = vmatpush1.msra.mxu0 0.0
    %1302 = vmatprep.subr.mxu0 0.0
    %1303 = vmatpush1.msra.mxu0 0.0
    %1304 = vmatprep.subr.mxu0 0.0
    %1305 = vmatpush1.msra.mxu0 0.0
    %1306 = vmatprep.subr.mxu0 0.0
    %1307 = vmatpush1.msra.mxu0 0.0
    %1308 = vmatprep.subr.mxu0 0.0
    %1309 = vmatpush1.msra.mxu0 0.0
    %1310 = vmatprep.subr.mxu0 0.0
    %1311 = vmatpush1.msra.mxu0 0.0
    %1312 = vmatprep.subr.mxu0 0.0
    %1313 = vmatpush1.msra.mxu0 0.0
    %1314 = vmatprep.subr.mxu0 0.0
    %1315 = vmatpush1.msra.mxu0 0.0
    %1316 = vmatprep.subr.mxu0 0.0
    %1317 = vmatpush1.msra.mxu0 0.0
    %1318 = vmatprep.subr.mxu0 0.0
    %1319 = vmatpush1.msra.mxu0 0.0
    %1320 = vmatprep.subr.mxu0 0.0
    %1321 = vmatpush1.msra.mxu0 0.0
    %1322 = vmatprep.subr.mxu0 0.0
    %1323 = vmatpush1.msra.mxu0 0.0
    %1324 = vmatprep.subr.mxu0 0.0
    %1325 = vmatpush1.msra.mxu0 0.0
    %1326 = vmatprep.subr.mxu0 0.0
    %1327 = vmatpush1.msra.mxu0 0.0
    %1328 = vmatprep.subr.mxu0 0.0
    %1329 = vmatpush1.msra.mxu0 0.0
    %1330 = vmatprep.subr.mxu0 0.0
    %1331 = vmatpush1.msra.mxu0 0.0
    %1332 = vmatprep.subr.mxu0 0.0
    %1333 = vmatpush1.msra.mxu0 0.0
    %1334 = vmatprep.subr.mxu0 0.0
    %1335 = vmatpush1.msra.mxu0 0.0
    %1336 = vmatprep.subr.mxu0 0.0
    %1337 = vmatpush1.msra.mxu0 0.0
    %1338 = vmatprep.subr.mxu0 0.0
    %1339 = vmatpush1.msra.mxu0 0.0
    %1340 = vmatprep.subr.mxu0 0.0
    %1341 = vmatpush1.msra.mxu0 0.0
    %1342 = vmatprep.mubr.f32.mxu0 0.0
    %1343 = vmatmul.mubr.f32.gmra.mrb[0].mxu0 %v1276
    %v1344 = vpop.f32.mrb[0].mxu0
    %v1345 = vadd.f32 0.0, %v1344
    %v1346 = vpop.f32.mrb[0].mxu0
    %1347 = vdwg.mxu0
    %v1348 = vlaneseq
    %v1349 = vshrl.u32 %v1348, 7
    %v1350 = vsub.s32 7, %v1349
    %v1351 = vrot.slane %v37, %v1350
    %v1352 = vadd.f32 %v1345, %v1351
    %1354 = vrot.lane.b32.xlu0 %v1352, 120
    %v1355 = vpop.permute.xlu0 %1354
    %1356 = vrot.lane.b32.xlu0 %v1352, 112
    %v1357 = vpop.permute.xlu0 %1356
    %1358 = vrot.lane.b32.xlu0 %v1352, 104
    %v1359 = vpop.permute.xlu0 %1358
    %v1360 = vlaneseq
    %v1361 = vshrl.u32 %v1360, 7
    %v1362 = vsub.s32 0, %v1361
    %v1363 = vrot.slane %v38, %v1362
    %1365 = vrot.lane.b32.xlu0 %v1363, 32
    %v1366 = vpop.permute.xlu0 %1365
    %v1368 = vadd.f32 %v1345, %v1366
    %1370 = vrot.lane.b32.xlu0 %v1368, 120
    %v1371 = vpop.permute.xlu0 %1370
    %1372 = vrot.lane.b32.xlu0 %v1368, 112
    %v1373 = vpop.permute.xlu0 %1372
    %1374 = vrot.lane.b32.xlu0 %v1368, 104
    %v1375 = vpop.permute.xlu0 %1374
    %v1376 = vmul.f32 %v1258, 0.35355338
    %v1378 = vsel %vm491, %v1376, 0
    %v1380 = vsel %vm491, %v1352, 0
    %v1382 = vsel %vm491, %v1355, 0
    %v1384 = vsel %vm491, %v1357, 0
    %v1386 = vsel %vm491, %v1359, 0
    %1388 = vmatprep.subr.mxu0 0.0
    %1389 = vmatpush1.xpose.msra.mxu0 %v1380
    %1390 = vmatprep.subr.mxu0 0.0
    %1391 = vmatpush1.xpose.msra.mxu0 %v1382
    %1392 = vmatprep.subr.mxu0 0.0
    %1393 = vmatpush1.xpose.msra.mxu0 %v1384
    %1394 = vmatprep.subr.mxu0 0.0
    %1395 = vmatpush1.xpose.msra.mxu0 %v1386
    %1396 = vmatprep.subr.mxu0 0.0
    %1397 = vmatpush1.xpose.msra.mxu0 0.0
    %1398 = vmatprep.subr.mxu0 0.0
    %1399 = vmatpush1.xpose.msra.mxu0 0.0
    %1400 = vmatprep.subr.mxu0 0.0
    %1401 = vmatpush1.xpose.msra.mxu0 0.0
    %1402 = vmatprep.subr.mxu0 0.0
    %1403 = vmatpush1.xpose.msra.mxu0 0.0
    %1404 = vmatprep.subr.mxu0 0.0
    %1405 = vmatpush1.xpose.msra.mxu0 0.0
    %1406 = vmatprep.subr.mxu0 0.0
    %1407 = vmatpush1.xpose.msra.mxu0 0.0
    %1408 = vmatprep.subr.mxu0 0.0
    %1409 = vmatpush1.xpose.msra.mxu0 0.0
    %1410 = vmatprep.subr.mxu0 0.0
    %1411 = vmatpush1.xpose.msra.mxu0 0.0
    %1412 = vmatprep.subr.mxu0 0.0
    %1413 = vmatpush1.xpose.msra.mxu0 0.0
    %1414 = vmatprep.subr.mxu0 0.0
    %1415 = vmatpush1.xpose.msra.mxu0 0.0
    %1416 = vmatprep.subr.mxu0 0.0
    %1417 = vmatpush1.xpose.msra.mxu0 0.0
    %1418 = vmatprep.subr.mxu0 0.0
    %1419 = vmatpush1.xpose.msra.mxu0 0.0
    %1420 = vmatprep.subr.mxu0 0.0
    %1421 = vmatpush1.xpose.msra.mxu0 0.0
    %1422 = vmatprep.subr.mxu0 0.0
    %1423 = vmatpush1.xpose.msra.mxu0 0.0
    %1424 = vmatprep.subr.mxu0 0.0
    %1425 = vmatpush1.xpose.msra.mxu0 0.0
    %1426 = vmatprep.subr.mxu0 0.0
    %1427 = vmatpush1.xpose.msra.mxu0 0.0
    %1428 = vmatprep.subr.mxu0 0.0
    %1429 = vmatpush1.xpose.msra.mxu0 0.0
    %1430 = vmatprep.subr.mxu0 0.0
    %1431 = vmatpush1.xpose.msra.mxu0 0.0
    %1432 = vmatprep.subr.mxu0 0.0
    %1433 = vmatpush1.xpose.msra.mxu0 0.0
    %1434 = vmatprep.subr.mxu0 0.0
    %1435 = vmatpush1.xpose.msra.mxu0 0.0
    %1436 = vmatprep.subr.mxu0 0.0
    %1437 = vmatpush1.xpose.msra.mxu0 0.0
    %1438 = vmatprep.subr.mxu0 0.0
    %1439 = vmatpush1.xpose.msra.mxu0 0.0
    %1440 = vmatprep.subr.mxu0 0.0
    %1441 = vmatpush1.xpose.msra.mxu0 0.0
    %1442 = vmatprep.subr.mxu0 0.0
    %1443 = vmatpush1.xpose.msra.mxu0 0.0
    %1444 = vmatprep.subr.mxu0 0.0
    %1445 = vmatpush1.xpose.msra.mxu0 0.0
    %1446 = vmatprep.subr.mxu0 0.0
    %1447 = vmatpush1.xpose.msra.mxu0 0.0
    %1448 = vmatprep.subr.mxu0 0.0
    %1449 = vmatpush1.xpose.msra.mxu0 0.0
    %1450 = vmatprep.subr.mxu0 0.0
    %1451 = vmatpush1.xpose.msra.mxu0 0.0
    %1452 = vmatprep.mubr.f32.mxu0 0.0
    %1453 = vmatmul.mubr.f32.gmra.mrb[0].mxu0 %v1378
    %v1454 = vpop.f32.mrb[0].mxu0
    %v1455 = vadd.f32 0.0, %v1454
    %v1456 = vpop.f32.mrb[0].mxu0
    %1457 = vdwg.mxu0
    %v1458 = vshra.s32 %v647, 2
    %vm1459 = vcmp.eq.s32.totalorder %v638, %v1458
    %v1460 = vsel %vm1459, %v1455, -1e+30
    %v1461 = vsel %vm311, %v1460, -inf
    %1462 = vmax.xlane.f32.xlu0 %v1461
    %v1463 = vpop.xlane.xlu0 %1462
    %v1464 = vsub.f32 %v1460, %v1463
    %v1465 = vmul.f32 %v1464, 1.442695
    %v1466 = vpow.pop %v1465
    %v1467 = vsel %vm311, %v1466, 0.0
    %1468 = vadd.xlane.f32.xlu0 %v1467
    %v1469 = vpop.xlane.xlu0 %1468
    %v1470 = vrcp.pop %v1469
    %v1471 = vmul.f32 %v1466, %v1470
    %1472 = vrot.lane.b32.xlu0 %v1368, 96
    %v1473 = vpop.permute.xlu0 %1472
    %1474 = vrot.lane.b32.xlu0 %v1371, 96
    %v1475 = vpop.permute.xlu0 %1474
    %1476 = vrot.lane.b32.xlu0 %v1373, 96
    %v1477 = vpop.permute.xlu0 %1476
    %1478 = vrot.lane.b32.xlu0 %v1375, 96
    %v1479 = vpop.permute.xlu0 %1478
    %v1485 = vsel %vm311, %v1471, 0
    %1487 = vmatprep.subr.mxu0 0.0
    %1488 = vmatpush1.msra.mxu0 %v1473
    %1489 = vmatprep.subr.mxu0 0.0
    %1490 = vmatpush1.msra.mxu0 %v1475
    %1491 = vmatprep.subr.mxu0 0.0
    %1492 = vmatpush1.msra.mxu0 %v1477
    %1493 = vmatprep.subr.mxu0 0.0
    %1494 = vmatpush1.msra.mxu0 %v1479
    %1495 = vmatprep.subr.mxu0 0.0
    %1496 = vmatpush1.msra.mxu0 0.0
    %1497 = vmatprep.subr.mxu0 0.0
    %1498 = vmatpush1.msra.mxu0 0.0
    %1499 = vmatprep.subr.mxu0 0.0
    %1500 = vmatpush1.msra.mxu0 0.0
    %1501 = vmatprep.subr.mxu0 0.0
    %1502 = vmatpush1.msra.mxu0 0.0
    %1503 = vmatprep.subr.mxu0 0.0
    %1504 = vmatpush1.msra.mxu0 0.0
    %1505 = vmatprep.subr.mxu0 0.0
    %1506 = vmatpush1.msra.mxu0 0.0
    %1507 = vmatprep.subr.mxu0 0.0
    %1508 = vmatpush1.msra.mxu0 0.0
    %1509 = vmatprep.subr.mxu0 0.0
    %1510 = vmatpush1.msra.mxu0 0.0
    %1511 = vmatprep.subr.mxu0 0.0
    %1512 = vmatpush1.msra.mxu0 0.0
    %1513 = vmatprep.subr.mxu0 0.0
    %1514 = vmatpush1.msra.mxu0 0.0
    %1515 = vmatprep.subr.mxu0 0.0
    %1516 = vmatpush1.msra.mxu0 0.0
    %1517 = vmatprep.subr.mxu0 0.0
    %1518 = vmatpush1.msra.mxu0 0.0
    %1519 = vmatprep.subr.mxu0 0.0
    %1520 = vmatpush1.msra.mxu0 0.0
    %1521 = vmatprep.subr.mxu0 0.0
    %1522 = vmatpush1.msra.mxu0 0.0
    %1523 = vmatprep.subr.mxu0 0.0
    %1524 = vmatpush1.msra.mxu0 0.0
    %1525 = vmatprep.subr.mxu0 0.0
    %1526 = vmatpush1.msra.mxu0 0.0
    %1527 = vmatprep.subr.mxu0 0.0
    %1528 = vmatpush1.msra.mxu0 0.0
    %1529 = vmatprep.subr.mxu0 0.0
    %1530 = vmatpush1.msra.mxu0 0.0
    %1531 = vmatprep.subr.mxu0 0.0
    %1532 = vmatpush1.msra.mxu0 0.0
    %1533 = vmatprep.subr.mxu0 0.0
    %1534 = vmatpush1.msra.mxu0 0.0
    %1535 = vmatprep.subr.mxu0 0.0
    %1536 = vmatpush1.msra.mxu0 0.0
    %1537 = vmatprep.subr.mxu0 0.0
    %1538 = vmatpush1.msra.mxu0 0.0
    %1539 = vmatprep.subr.mxu0 0.0
    %1540 = vmatpush1.msra.mxu0 0.0
    %1541 = vmatprep.subr.mxu0 0.0
    %1542 = vmatpush1.msra.mxu0 0.0
    %1543 = vmatprep.subr.mxu0 0.0
    %1544 = vmatpush1.msra.mxu0 0.0
    %1545 = vmatprep.subr.mxu0 0.0
    %1546 = vmatpush1.msra.mxu0 0.0
    %1547 = vmatprep.subr.mxu0 0.0
    %1548 = vmatpush1.msra.mxu0 0.0
    %1549 = vmatprep.subr.mxu0 0.0
    %1550 = vmatpush1.msra.mxu0 0.0
    %1551 = vmatprep.mubr.f32.mxu0 0.0
    %1552 = vmatmul.mubr.f32.gmra.mrb[0].mxu0 %v1485
    %v1553 = vpop.f32.mrb[0].mxu0
    %v1554 = vadd.f32 0.0, %v1553
    %v1555 = vpop.f32.mrb[0].mxu0
    %1556 = vdwg.mxu0
    %v1558 = vrot.slane %v1554, 2
    %1559 = vrot.lane.b32.xlu0 %v1558, 8
    %v1560 = vpop.permute.xlu0 %1559
    %v1562 = vrot.slane %v1554, 4
    %1563 = vrot.lane.b32.xlu0 %v1562, 16
    %v1564 = vpop.permute.xlu0 %1563
    %v1566 = vrot.slane %v1554, 6
    %1567 = vrot.lane.b32.xlu0 %v1566, 24
    %v1568 = vpop.permute.xlu0 %1567
    %v1570 = vsel %vm491, %v1554, %v1560
    %v1571 = vsel %vm941, %v1570, %v1564
    %v1572 = vsel %vm944, %v1571, %v1568
    %v1573 = vlaneseq
    %v1574 = vshrl.u32 %v1573, 7
    %v1575 = vsub.s32 1, %v1574
    %v1576 = vrot.slane %v38, %v1575
    %1577 = vrot.lane.b32.xlu0 %v26, 32
    %v1578 = vpop.permute.xlu0 %1577
    %1579 = vrot.lane.b32.xlu0 %v29, 32
    %v1580 = vpop.permute.xlu0 %1579
    %1581 = vrot.lane.b32.xlu0 %v32, 32
    %v1582 = vpop.permute.xlu0 %1581
    %1583 = vrot.lane.b32.xlu0 %v35, 32
    %v1584 = vpop.permute.xlu0 %1583
    %v1590 = vsel %vm311, %v1572, 0
    %1592 = vmatprep.subr.mxu0 0.0
    %1593 = vmatpush1.msra.mxu0 %v1578
    %1594 = vmatprep.subr.mxu0 0.0
    %1595 = vmatpush1.msra.mxu0 %v1580
    %1596 = vmatprep.subr.mxu0 0.0
    %1597 = vmatpush1.msra.mxu0 %v1582
    %1598 = vmatprep.subr.mxu0 0.0
    %1599 = vmatpush1.msra.mxu0 %v1584
    %1600 = vmatprep.subr.mxu0 0.0
    %1601 = vmatpush1.msra.mxu0 0.0
    %1602 = vmatprep.subr.mxu0 0.0
    %1603 = vmatpush1.msra.mxu0 0.0
    %1604 = vmatprep.subr.mxu0 0.0
    %1605 = vmatpush1.msra.mxu0 0.0
    %1606 = vmatprep.subr.mxu0 0.0
    %1607 = vmatpush1.msra.mxu0 0.0
    %1608 = vmatprep.subr.mxu0 0.0
    %1609 = vmatpush1.msra.mxu0 0.0
    %1610 = vmatprep.subr.mxu0 0.0
    %1611 = vmatpush1.msra.mxu0 0.0
    %1612 = vmatprep.subr.mxu0 0.0
    %1613 = vmatpush1.msra.mxu0 0.0
    %1614 = vmatprep.subr.mxu0 0.0
    %1615 = vmatpush1.msra.mxu0 0.0
    %1616 = vmatprep.subr.mxu0 0.0
    %1617 = vmatpush1.msra.mxu0 0.0
    %1618 = vmatprep.subr.mxu0 0.0
    %1619 = vmatpush1.msra.mxu0 0.0
    %1620 = vmatprep.subr.mxu0 0.0
    %1621 = vmatpush1.msra.mxu0 0.0
    %1622 = vmatprep.subr.mxu0 0.0
    %1623 = vmatpush1.msra.mxu0 0.0
    %1624 = vmatprep.subr.mxu0 0.0
    %1625 = vmatpush1.msra.mxu0 0.0
    %1626 = vmatprep.subr.mxu0 0.0
    %1627 = vmatpush1.msra.mxu0 0.0
    %1628 = vmatprep.subr.mxu0 0.0
    %1629 = vmatpush1.msra.mxu0 0.0
    %1630 = vmatprep.subr.mxu0 0.0
    %1631 = vmatpush1.msra.mxu0 0.0
    %1632 = vmatprep.subr.mxu0 0.0
    %1633 = vmatpush1.msra.mxu0 0.0
    %1634 = vmatprep.subr.mxu0 0.0
    %1635 = vmatpush1.msra.mxu0 0.0
    %1636 = vmatprep.subr.mxu0 0.0
    %1637 = vmatpush1.msra.mxu0 0.0
    %1638 = vmatprep.subr.mxu0 0.0
    %1639 = vmatpush1.msra.mxu0 0.0
    %1640 = vmatprep.subr.mxu0 0.0
    %1641 = vmatpush1.msra.mxu0 0.0
    %1642 = vmatprep.subr.mxu0 0.0
    %1643 = vmatpush1.msra.mxu0 0.0
    %1644 = vmatprep.subr.mxu0 0.0
    %1645 = vmatpush1.msra.mxu0 0.0
    %1646 = vmatprep.subr.mxu0 0.0
    %1647 = vmatpush1.msra.mxu0 0.0
    %1648 = vmatprep.subr.mxu0 0.0
    %1649 = vmatpush1.msra.mxu0 0.0
    %1650 = vmatprep.subr.mxu0 0.0
    %1651 = vmatpush1.msra.mxu0 0.0
    %1652 = vmatprep.subr.mxu0 0.0
    %1653 = vmatpush1.msra.mxu0 0.0
    %1654 = vmatprep.subr.mxu0 0.0
    %1655 = vmatpush1.msra.mxu0 0.0
    %1656 = vmatprep.mubr.f32.mxu0 0.0
    %1657 = vmatmul.mubr.f32.gmra.mrb[0].mxu0 %v1590
    %v1658 = vpop.f32.mrb[0].mxu0
    %v1659 = vadd.f32 %v1576, %v1658
    %v1660 = vpop.f32.mrb[0].mxu0
    %1661 = vdwg.mxu0
    %v1662 = vrot.slane %v1471, 2
    %1663 = vrot.lane.b32.xlu0 %v1662, 120
    %v1664 = vpop.permute.xlu0 %1663
    %v1666 = vadd.f32 %v1471, %v1664
    %v1667 = vrot.slane %v1471, 4
    %1668 = vrot.lane.b32.xlu0 %v1667, 112
    %v1669 = vpop.permute.xlu0 %1668
    %v1671 = vadd.f32 %v1666, %v1669
    %v1672 = vrot.slane %v1471, 6
    %1673 = vrot.lane.b32.xlu0 %v1672, 104
    %v1674 = vpop.permute.xlu0 %1673
    %v1676 = vadd.f32 %v1671, %v1674
    %v1677 = vmul.f32 %v1676, 0.25
    %1682 = vrot.lane.b32.xlu0 %v27, 96
    %v1683 = vpop.permute.xlu0 %1682
    %1684 = vrot.lane.b32.xlu0 %v30, 96
    %v1685 = vpop.permute.xlu0 %1684
    %1686 = vrot.lane.b32.xlu0 %v33, 96
    %v1687 = vpop.permute.xlu0 %1686
    %1688 = vrot.lane.b32.xlu0 %v36, 96
    %v1689 = vpop.permute.xlu0 %1688
    %v1695 = vsel %vm311, %v1659, 0
    %1697 = vmatprep.subr.mxu0 0.0
    %1698 = vmatpush1.msra.mxu0 %v1683
    %1699 = vmatprep.subr.mxu0 0.0
    %1700 = vmatpush1.msra.mxu0 %v1685
    %1701 = vmatprep.subr.mxu0 0.0
    %1702 = vmatpush1.msra.mxu0 %v1687
    %1703 = vmatprep.subr.mxu0 0.0
    %1704 = vmatpush1.msra.mxu0 %v1689
    %1705 = vmatprep.subr.mxu0 0.0
    %1706 = vmatpush1.msra.mxu0 0.0
    %1707 = vmatprep.subr.mxu0 0.0
    %1708 = vmatpush1.msra.mxu0 0.0
    %1709 = vmatprep.subr.mxu0 0.0
    %1710 = vmatpush1.msra.mxu0 0.0
    %1711 = vmatprep.subr.mxu0 0.0
    %1712 = vmatpush1.msra.mxu0 0.0
    %1713 = vmatprep.subr.mxu0 0.0
    %1714 = vmatpush1.msra.mxu0 0.0
    %1715 = vmatprep.subr.mxu0 0.0
    %1716 = vmatpush1.msra.mxu0 0.0
    %1717 = vmatprep.subr.mxu0 0.0
    %1718 = vmatpush1.msra.mxu0 0.0
    %1719 = vmatprep.subr.mxu0 0.0
    %1720 = vmatpush1.msra.mxu0 0.0
    %1721 = vmatprep.subr.mxu0 0.0
    %1722 = vmatpush1.msra.mxu0 0.0
    %1723 = vmatprep.subr.mxu0 0.0
    %1724 = vmatpush1.msra.mxu0 0.0
    %1725 = vmatprep.subr.mxu0 0.0
    %1726 = vmatpush1.msra.mxu0 0.0
    %1727 = vmatprep.subr.mxu0 0.0
    %1728 = vmatpush1.msra.mxu0 0.0
    %1729 = vmatprep.subr.mxu0 0.0
    %1730 = vmatpush1.msra.mxu0 0.0
    %1731 = vmatprep.subr.mxu0 0.0
    %1732 = vmatpush1.msra.mxu0 0.0
    %1733 = vmatprep.subr.mxu0 0.0
    %1734 = vmatpush1.msra.mxu0 0.0
    %1735 = vmatprep.subr.mxu0 0.0
    %1736 = vmatpush1.msra.mxu0 0.0
    %1737 = vmatprep.subr.mxu0 0.0
    %1738 = vmatpush1.msra.mxu0 0.0
    %1739 = vmatprep.subr.mxu0 0.0
    %1740 = vmatpush1.msra.mxu0 0.0
    %1741 = vmatprep.subr.mxu0 0.0
    %1742 = vmatpush1.msra.mxu0 0.0
    %1743 = vmatprep.subr.mxu0 0.0
    %1744 = vmatpush1.msra.mxu0 0.0
    %1745 = vmatprep.subr.mxu0 0.0
    %1746 = vmatpush1.msra.mxu0 0.0
    %1747 = vmatprep.subr.mxu0 0.0
    %1748 = vmatpush1.msra.mxu0 0.0
    %1749 = vmatprep.subr.mxu0 0.0
    %1750 = vmatpush1.msra.mxu0 0.0
    %1751 = vmatprep.subr.mxu0 0.0
    %1752 = vmatpush1.msra.mxu0 0.0
    %1753 = vmatprep.subr.mxu0 0.0
    %1754 = vmatpush1.msra.mxu0 0.0
    %1755 = vmatprep.subr.mxu0 0.0
    %1756 = vmatpush1.msra.mxu0 0.0
    %1757 = vmatprep.subr.mxu0 0.0
    %1758 = vmatpush1.msra.mxu0 0.0
    %1759 = vmatprep.subr.mxu0 0.0
    %1760 = vmatpush1.msra.mxu0 0.0
    %1761 = vmatprep.mubr.f32.mxu0 0.0
    %1762 = vmatmul.mubr.f32.gmra.mrb[0].mxu0 %v1695
    %v1763 = vpop.f32.mrb[0].mxu0
    %v1764 = vadd.f32 0.0, %v1763
    %v1765 = vpop.f32.mrb[0].mxu0
    %1766 = vdwg.mxu0
    %v1768 = vsel %vm311, %v1164, 0
    %1770 = vmatprep.subr.mxu0 0.0
    %1771 = vmatpush1.msra.mxu0 %v27
    %1772 = vmatprep.subr.mxu0 0.0
    %1773 = vmatpush1.msra.mxu0 %v30
    %1774 = vmatprep.subr.mxu0 0.0
    %1775 = vmatpush1.msra.mxu0 %v33
    %1776 = vmatprep.subr.mxu0 0.0
    %1777 = vmatpush1.msra.mxu0 %v36
    %1778 = vmatprep.subr.mxu0 0.0
    %1779 = vmatpush1.msra.mxu0 0.0
    %1780 = vmatprep.subr.mxu0 0.0
    %1781 = vmatpush1.msra.mxu0 0.0
    %1782 = vmatprep.subr.mxu0 0.0
    %1783 = vmatpush1.msra.mxu0 0.0
    %1784 = vmatprep.subr.mxu0 0.0
    %1785 = vmatpush1.msra.mxu0 0.0
    %1786 = vmatprep.subr.mxu0 0.0
    %1787 = vmatpush1.msra.mxu0 0.0
    %1788 = vmatprep.subr.mxu0 0.0
    %1789 = vmatpush1.msra.mxu0 0.0
    %1790 = vmatprep.subr.mxu0 0.0
    %1791 = vmatpush1.msra.mxu0 0.0
    %1792 = vmatprep.subr.mxu0 0.0
    %1793 = vmatpush1.msra.mxu0 0.0
    %1794 = vmatprep.subr.mxu0 0.0
    %1795 = vmatpush1.msra.mxu0 0.0
    %1796 = vmatprep.subr.mxu0 0.0
    %1797 = vmatpush1.msra.mxu0 0.0
    %1798 = vmatprep.subr.mxu0 0.0
    %1799 = vmatpush1.msra.mxu0 0.0
    %1800 = vmatprep.subr.mxu0 0.0
    %1801 = vmatpush1.msra.mxu0 0.0
    %1802 = vmatprep.subr.mxu0 0.0
    %1803 = vmatpush1.msra.mxu0 0.0
    %1804 = vmatprep.subr.mxu0 0.0
    %1805 = vmatpush1.msra.mxu0 0.0
    %1806 = vmatprep.subr.mxu0 0.0
    %1807 = vmatpush1.msra.mxu0 0.0
    %1808 = vmatprep.subr.mxu0 0.0
    %1809 = vmatpush1.msra.mxu0 0.0
    %1810 = vmatprep.subr.mxu0 0.0
    %1811 = vmatpush1.msra.mxu0 0.0
    %1812 = vmatprep.subr.mxu0 0.0
    %1813 = vmatpush1.msra.mxu0 0.0
    %1814 = vmatprep.subr.mxu0 0.0
    %1815 = vmatpush1.msra.mxu0 0.0
    %1816 = vmatprep.subr.mxu0 0.0
    %1817 = vmatpush1.msra.mxu0 0.0
    %1818 = vmatprep.subr.mxu0 0.0
    %1819 = vmatpush1.msra.mxu0 0.0
    %1820 = vmatprep.subr.mxu0 0.0
    %1821 = vmatpush1.msra.mxu0 0.0
    %1822 = vmatprep.subr.mxu0 0.0
    %1823 = vmatpush1.msra.mxu0 0.0
    %1824 = vmatprep.subr.mxu0 0.0
    %1825 = vmatpush1.msra.mxu0 0.0
    %1826 = vmatprep.subr.mxu0 0.0
    %1827 = vmatpush1.msra.mxu0 0.0
    %1828 = vmatprep.subr.mxu0 0.0
    %1829 = vmatpush1.msra.mxu0 0.0
    %1830 = vmatprep.subr.mxu0 0.0
    %1831 = vmatpush1.msra.mxu0 0.0
    %1832 = vmatprep.subr.mxu0 0.0
    %1833 = vmatpush1.msra.mxu0 0.0
    %1834 = vmatprep.mubr.f32.mxu0 0.0
    %1835 = vmatmul.mubr.f32.gmra.mrb[0].mxu0 %v1768
    %v1836 = vpop.f32.mrb[0].mxu0
    %v1837 = vadd.f32 %v1764, %v1836
    %v1838 = vpop.f32.mrb[0].mxu0
    %1839 = vdwg.mxu0
    %v1840 = vlaneseq
    %v1841 = vshrl.u32 %v1840, 7
    %v1842 = vsub.s32 4, %v1841
    %v1843 = vrot.slane %v38, %v1842
    %v1844 = vadd.f32 %v1837, %v1843
    %v1845 = vxor.u32 %v1844, 2147483648
    %v1846 = vmul.f32 %v1845, 1.442695
    %v1847 = vpow.pop %v1846
    %v1848 = vadd.f32 %v1847, 1.0
    %v1849 = vrcp.pop %v1848
    %v1850 = vmul.f32 1.0, %v1849
    %v1851 = vmul.f32 %v1850, %v1164
    %v1852 = vsub.f32 1.0, %v1850
    %v1853 = vmul.f32 %v1852, %v1659
    %v1854 = vadd.f32 %v1851, %v1853
    %v1855 = vlaneseq
    %v1856 = vshrl.u32 %v1855, 7
    %v1857 = vsub.s32 5, %v1856
    %v1858 = vrot.slane %v38, %v1857
    %1859 = vrot.lane.b32.xlu0 %v27, 64
    %v1860 = vpop.permute.xlu0 %1859
    %1861 = vrot.lane.b32.xlu0 %v30, 64
    %v1862 = vpop.permute.xlu0 %1861
    %1863 = vrot.lane.b32.xlu0 %v33, 64
    %v1864 = vpop.permute.xlu0 %1863
    %1865 = vrot.lane.b32.xlu0 %v36, 64
    %v1866 = vpop.permute.xlu0 %1865
    %v1872 = vsel %vm311, %v1854, 0
    %1874 = vmatprep.subr.mxu0 0.0
    %1875 = vmatpush1.msra.mxu0 %v1860
    %1876 = vmatprep.subr.mxu0 0.0
    %1877 = vmatpush1.msra.mxu0 %v1862
    %1878 = vmatprep.subr.mxu0 0.0
    %1879 = vmatpush1.msra.mxu0 %v1864
    %1880 = vmatprep.subr.mxu0 0.0
    %1881 = vmatpush1.msra.mxu0 %v1866
    %1882 = vmatprep.subr.mxu0 0.0
    %1883 = vmatpush1.msra.mxu0 0.0
    %1884 = vmatprep.subr.mxu0 0.0
    %1885 = vmatpush1.msra.mxu0 0.0
    %1886 = vmatprep.subr.mxu0 0.0
    %1887 = vmatpush1.msra.mxu0 0.0
    %1888 = vmatprep.subr.mxu0 0.0
    %1889 = vmatpush1.msra.mxu0 0.0
    %1890 = vmatprep.subr.mxu0 0.0
    %1891 = vmatpush1.msra.mxu0 0.0
    %1892 = vmatprep.subr.mxu0 0.0
    %1893 = vmatpush1.msra.mxu0 0.0
    %1894 = vmatprep.subr.mxu0 0.0
    %1895 = vmatpush1.msra.mxu0 0.0
    %1896 = vmatprep.subr.mxu0 0.0
    %1897 = vmatpush1.msra.mxu0 0.0
    %1898 = vmatprep.subr.mxu0 0.0
    %1899 = vmatpush1.msra.mxu0 0.0
    %1900 = vmatprep.subr.mxu0 0.0
    %1901 = vmatpush1.msra.mxu0 0.0
    %1902 = vmatprep.subr.mxu0 0.0
    %1903 = vmatpush1.msra.mxu0 0.0
    %1904 = vmatprep.subr.mxu0 0.0
    %1905 = vmatpush1.msra.mxu0 0.0
    %1906 = vmatprep.subr.mxu0 0.0
    %1907 = vmatpush1.msra.mxu0 0.0
    %1908 = vmatprep.subr.mxu0 0.0
    %1909 = vmatpush1.msra.mxu0 0.0
    %1910 = vmatprep.subr.mxu0 0.0
    %1911 = vmatpush1.msra.mxu0 0.0
    %1912 = vmatprep.subr.mxu0 0.0
    %1913 = vmatpush1.msra.mxu0 0.0
    %1914 = vmatprep.subr.mxu0 0.0
    %1915 = vmatpush1.msra.mxu0 0.0
    %1916 = vmatprep.subr.mxu0 0.0
    %1917 = vmatpush1.msra.mxu0 0.0
    %1918 = vmatprep.subr.mxu0 0.0
    %1919 = vmatpush1.msra.mxu0 0.0
    %1920 = vmatprep.subr.mxu0 0.0
    %1921 = vmatpush1.msra.mxu0 0.0
    %1922 = vmatprep.subr.mxu0 0.0
    %1923 = vmatpush1.msra.mxu0 0.0
    %1924 = vmatprep.subr.mxu0 0.0
    %1925 = vmatpush1.msra.mxu0 0.0
    %1926 = vmatprep.subr.mxu0 0.0
    %1927 = vmatpush1.msra.mxu0 0.0
    %1928 = vmatprep.subr.mxu0 0.0
    %1929 = vmatpush1.msra.mxu0 0.0
    %1930 = vmatprep.subr.mxu0 0.0
    %1931 = vmatpush1.msra.mxu0 0.0
    %1932 = vmatprep.subr.mxu0 0.0
    %1933 = vmatpush1.msra.mxu0 0.0
    %1934 = vmatprep.subr.mxu0 0.0
    %1935 = vmatpush1.msra.mxu0 0.0
    %1936 = vmatprep.subr.mxu0 0.0
    %1937 = vmatpush1.msra.mxu0 0.0
    %1938 = vmatprep.mubr.f32.mxu0 0.0
    %1939 = vmatmul.mubr.f32.gmra.mrb[0].mxu0 %v1872
    %v1940 = vpop.f32.mrb[0].mxu0
    %v1941 = vadd.f32 %v1858, %v1940
    %v1942 = vpop.f32.mrb[0].mxu0
    %1943 = vdwg.mxu0
    %v1944 = vmax.f32 %v1941, 0.0
    %1945 = vst [vmem:[#allocation2] sm:$0xff] 0.0
    %1946 = vst [vmem:[#allocation2 + $0x8] sm:$0xff] 0.0
    %1947 = vst.msk [vmem:[#allocation2] sm:$0xff] %vm941, %v1072
    %1948 = vst.msk [vmem:[#allocation2 + $0x8] sm:$0xff] %vm941, %v1073
    %1950 = vrot.lane.b32.xlu0 %v1944, 16
    %v1951 = vpop.permute.xlu0 %1950
    %vm1953 = vcmask 386176
    %1954 = vst.msk [vmem:[#allocation2] sm:$0x3] %vm1953, %v1951
    %1956 = vrot.lane.b32.xlu0 %v1850, 48
    %v1957 = vpop.permute.xlu0 %1956
    %vm1959 = vcmask 648576
    %1960 = vst.msk [vmem:[#allocation2] sm:$0x3] %vm1959, %v1957
    %1962 = vrot.lane.b32.xlu0 %v1677, 80
    %v1963 = vpop.permute.xlu0 %1962
    %vm1965 = vcmask 714368
    %1966 = vst.msk [vmem:[#allocation2] sm:$0x3] %vm1965, %v1963
    // Predicated region
    $region22: #{tpu_custom_call.1} parent=1 // pred_check
      _
    $region23: #{tpu_custom_call.1} parent=1 // pred_check_branch
      %1968 = sbr.rel (0) target = $region25
    $region24: #{tpu_custom_call.1} parent=1 // pred_region
      %s1970 = ssub.s32 256, 256
      %1971 = vsyncadd [#allocation3], %s1970
      %s1972 = sshll.u32 [#allocation2], 4
      %s1973 = int_to_ptr.vmem [resolvable:$true] %s1972
      %1978 = dma.vmem_to_hbm [thread:$0]  %s1973, 256, %s5, [#allocation3], 128, 128, 8
    $region25: #{tpu_custom_call.1} parent=1 // pred_fallthru
      _
    // Predicated region
    $region26: #{tpu_custom_call.1} parent=1 // pred_check
      _
    $region27: #{tpu_custom_call.1} parent=1 // pred_check_branch
      %1980 = sbr.rel (0) target = $region29
    $region28: #{tpu_custom_call.1} parent=1 // pred_region
      %1981 = dma.done [#allocation3], 256
    $region29: #{tpu_custom_call.1} parent=1 // pred_fallthru
      _
    %1982 = vsyncpa [#allocation3], 1

</llo_original>
